<compile_context>
chip_gen: v7x
topology: tpu7x:2x2x1
jax: 0.10.0
libtpu: 0.0.40
codegen_flags: <defaults>
</compile_context>

<pallas_src>
import jax
import jax.numpy as jnp
from jax.experimental import pallas as pl
from jax.experimental.pallas import tpu as pltpu

BN_EPS = 1e-5


def _round_up(x, m):
    return (x + m - 1) // m * m


# --------------------------------------------------------------------------
# Fused SegmentationHead kernel
# --------------------------------------------------------------------------
def _seghead_kernel(xa_ref, xb_ref, xc_ref, w1_ref, dw_ref, s_ref, b_ref,
                    w2_ref, b2_ref, o_ref, ybuf):
    """One (batch, row-tile) step of the fused head.

    xa: (1, TH, Wp, Cin) bf16  rows [t*TH, t*TH+TH) of the zero-padded input
    xb: (1, 1,  Wp, Cin) bf16  halo row t*TH+TH
    xc: (1, 1,  Wp, Cin) bf16  halo row t*TH+TH+1
    w1: (Cin, Ce) bf16         1x1 expansion conv
    dw: (9, Ce)   f32          depthwise 3x3 taps, index = dh*3+dw
    s/b:(1, Ce)   f32          folded BatchNorm scale / shift
    w2: (Ce, ncls) bf16        final 1x1 conv
    b2: (1, ncls)  f32         final conv bias
    o : (1, TH, W, ncls) f32
    ybuf: VMEM scratch (TH+2, Wp, Ce) f32 -- post-1x1 activation incl. halo
    """
    _, TH, Wp, Cin = xa_ref.shape
    Ce = w1_ref.shape[1]
    _, _, W, ncls = o_ref.shape

    # ---- 1x1 pointwise expansion (MXU, bf16 x bf16 -> f32 accumulate) ----
    w1 = w1_ref[...]
    ybuf[0:TH] = jnp.dot(
        xa_ref[0].reshape(TH * Wp, Cin), w1,
        preferred_element_type=jnp.float32).reshape(TH, Wp, Ce)
    ybuf[TH] = jnp.dot(xb_ref[0, 0], w1, preferred_element_type=jnp.float32)
    ybuf[TH + 1] = jnp.dot(xc_ref[0, 0], w1, preferred_element_type=jnp.float32)

    # ---- depthwise 3x3, padding=1 (VPU) ----------------------------------
    # Row taps: contiguous row offsets into the scratch (no relayout).
    # Column taps: static sub-window slices of the already padded width.
    dwt = dw_ref[...]
    acc = jnp.zeros((TH, W, Ce), jnp.float32)
    for dh in range(3):
        rows = ybuf[dh:dh + TH]                       # (TH, Wp, Ce)
        for dwi in range(3):
            tap = dwt[dh * 3 + dwi].reshape(1, 1, Ce)
            acc = acc + rows[:, dwi:dwi + W, :] * tap

    # ---- BatchNorm (folded) + Hardswish -----------------------------------
    a = acc * s_ref[...].reshape(1, 1, Ce) + b_ref[...].reshape(1, 1, Ce)
    h = a * jnp.clip(a + 3.0, 0.0, 6.0) * (1.0 / 6.0)
    # TODO(synk): Dropout(0.1) is the identity in inference mode (no RNG mask).

    # ---- final 1x1 conv + bias (MXU) --------------------------------------
    out = jnp.dot(h.reshape(TH * W, Ce).astype(w2_ref.dtype), w2_ref[...],
                  preferred_element_type=jnp.float32) + b2_ref[...]
    o_ref[0] = out.reshape(TH, W, ncls)


# --------------------------------------------------------------------------
# Tiling / VMEM budgeting
# --------------------------------------------------------------------------
def _block_vmem_bytes(TH, Wp, Cin, Ce, ncls):
    W = Wp - 2
    in_b = 2 * ((TH + 2) * Wp * Cin) * 2             # bf16 inputs, double-buffered
    out_b = 2 * (TH * W * ncls) * 4                  # f32 output tile, double-buffered
    scratch = (TH + 2) * Wp * Ce * 4                 # ybuf
    work = 3 * TH * Wp * Ce * 4                      # acc + live temporaries (slack)
    weights = 2 * ((Cin * Ce + Ce * ncls) * 2 + (9 * Ce + 2 * Ce + ncls) * 4)
    return in_b + out_b + scratch + work + weights


def _pick_row_tile(H, Wp, Cin, Ce, ncls, budget_bytes=8 << 20):
    # Largest divisor of H whose block fits a conservative VMEM budget
    # (fits every generation's *default* scoped limit: v5e 16MiB, v6e/v7x
    # 32MiB); prefer >= 2 row tiles so the pipeline / megacore have multiple
    # parallel grid points to work with.
    divisors = [d for d in range(1, H + 1) if H % d == 0]
    cap = H if H <= 8 else H // 2
    fits = [d for d in divisors
            if _block_vmem_bytes(d, Wp, Cin, Ce, ncls) <= budget_bytes]
    preferred = [d for d in fits if d <= cap]
    if preferred:
        return max(preferred)
    return max(fits) if fits else 1


# --------------------------------------------------------------------------
# JAX glue: bilinear upsample with align_corners=True (resampling, not hot path)
# --------------------------------------------------------------------------
def _resize_matrix_ac(out_size, in_size):
    # Weights matching F.interpolate(mode='bilinear', align_corners=True).
    if in_size == 1:
        return jnp.ones((out_size, 1), jnp.float32)
    if out_size == 1:
        src = jnp.zeros((1,), jnp.float32)
    else:
        src = jnp.arange(out_size, dtype=jnp.float32) * (
            (in_size - 1) / (out_size - 1))
    i0 = jnp.clip(jnp.floor(src).astype(jnp.int32), 0, in_size - 1)
    i1 = jnp.minimum(i0 + 1, in_size - 1)
    frac = src - i0.astype(jnp.float32)
    m = jnp.zeros((out_size, in_size), jnp.float32)
    rows = jnp.arange(out_size)
    m = m.at[rows, i0].add(1.0 - frac)
    m = m.at[rows, i1].add(frac)
    return m


def _bilinear_resize_align_corners(t, H, W):
    # t: (N, h, w, C) -> (N, H, W, C)
    _, h, w, _ = t.shape
    Ah = _resize_matrix_ac(H, h)
    Aw = _resize_matrix_ac(W, w)
    return jnp.einsum('Hh,nhwc,Ww->nHWc', Ah, t, Aw)


# --------------------------------------------------------------------------
# Forward
# --------------------------------------------------------------------------
def segmentation_head_forward(x_nchw, params, scale=None):
    """x_nchw: (N, Cin, H, W) float -> (N, n_classes, H*, W*) float32."""
    w1, dwt = params['w1'], params['dw']
    bn_s, bn_b = params['bn_scale'], params['bn_shift']
    w2, b2 = params['w2'], params['b2']
    Cin, Ce = w1.shape
    ncls = w2.shape[1]

    x = jnp.transpose(x_nchw, (0, 2, 3, 1)).astype(jnp.float32)   # NHWC
    N, H, W, _ = x.shape

    # Zero-pad once in HBM.  conv1x1 has no bias, so zero-padded x rows/cols
    # map to zero-padded post-1x1 activations == Conv2d(padding=1) semantics.
    # Width padded to a multiple of 8 keeps in-kernel tiles sublane-aligned.
    Wp = _round_up(W + 2, 8)
    x_pad = jnp.pad(x, ((0, 0), (1, 1), (1, Wp - W - 1), (0, 0)))
    x_pad = x_pad.astype(jnp.bfloat16)                            # bf16 MXU path

    TH = _pick_row_tile(H, Wp, Cin, Ce, ncls)
    nT = H // TH
    est = _block_vmem_bytes(TH, Wp, Cin, Ce, ncls)
    vmem_limit = None
    if est > (12 << 20):
        # Raise the scoped VMEM limit only when the chosen block needs it;
        # keep it below v7x's 64 MiB physical VMEM.
        vmem_limit = int(min(max(2 * est, 32 << 20), 56 << 20))
    compiler_params = pltpu.CompilerParams(
        dimension_semantics=("parallel", "parallel"),
        vmem_limit_bytes=vmem_limit)

    row_spec = pl.BlockSpec((1, TH, Wp, Cin), lambda n, t: (n, t, 0, 0))
    halo0 = pl.BlockSpec((1, 1, Wp, Cin), lambda n, t: (n, t * TH + TH, 0, 0))
    halo1 = pl.BlockSpec((1, 1, Wp, Cin), lambda n, t: (n, t * TH + TH + 1, 0, 0))
    rep2 = lambda n, t: (0, 0)

    # NOTE: ncls < 128 makes the output stores lane-masked; production configs
    # should keep n_classes (or a zero-padded multiple of 128) lane-dense.
    out = pl.pallas_call(
        _seghead_kernel,
        out_shape=jax.ShapeDtypeStruct((N, H, W, ncls), jnp.float32),
        grid=(N, nT),
        in_specs=[
            row_spec, halo0, halo1,
            pl.BlockSpec((Cin, Ce), rep2),
            pl.BlockSpec((9, Ce), rep2),
            pl.BlockSpec((1, Ce), rep2),
            pl.BlockSpec((1, Ce), rep2),
            pl.BlockSpec((Ce, ncls), rep2),
            pl.BlockSpec((1, ncls), rep2),
        ],
        out_specs=pl.BlockSpec((1, TH, W, ncls), lambda n, t: (n, t, 0, 0)),
        scratch_shapes=[pltpu.VMEM((TH + 2, Wp, Ce), jnp.float32)],
        compiler_params=compiler_params,
    )(x_pad, x_pad, x_pad,
      w1.astype(jnp.bfloat16), dwt.astype(jnp.float32),
      bn_s.reshape(1, Ce), bn_b.reshape(1, Ce),
      w2.astype(jnp.bfloat16), b2.reshape(1, ncls))

    if scale is not None:
        # TODO(synk): bilinear upsample (align_corners=True) kept as plain JAX
        # resampling glue; it is not the matmul/conv hot path.
        out = _bilinear_resize_align_corners(out, H * scale, W * scale)
    return jnp.transpose(out, (0, 3, 1, 2))                      # back to NCHW


# --------------------------------------------------------------------------
# Parameters (deterministic, synthetic) and pure-JAX reference
# --------------------------------------------------------------------------
def make_params(key, in_channels, n_classes, expansion=1):
    Ce = in_channels * expansion
    ks = iter(jax.random.split(key, 16))
    w1 = 0.1 * jax.random.normal(next(ks), (in_channels, Ce), jnp.float32)
    # depthwise taps: dw[dh*3+dw_, ch] == torch_weight[ch, 0, dh, dw_]
    dw = 0.1 * jax.random.normal(next(ks), (9, Ce), jnp.float32)
    gamma = 1.0 + 0.02 * jax.random.normal(next(ks), (Ce,), jnp.float32)
    beta = 0.02 * jax.random.normal(next(ks), (Ce,), jnp.float32)
    mean = 0.1 * jax.random.normal(next(ks), (Ce,), jnp.float32)
    var = jnp.abs(jax.random.normal(next(ks), (Ce,), jnp.float32)) + 0.5
    scale = gamma / jnp.sqrt(var + BN_EPS)
    shift = beta - mean * scale
    w2 = 0.1 * jax.random.normal(next(ks), (Ce, n_classes), jnp.float32)
    b2 = 0.1 * jax.random.normal(next(ks), (n_classes,), jnp.float32)
    return dict(w1=w1, dw=dw, bn_scale=scale, bn_shift=shift, w2=w2, b2=b2)


def reference_forward(x_nchw, params, scale=None):
    x = jnp.transpose(x_nchw, (0, 2, 3, 1)).astype(jnp.float32)
    N, H, W, _ = x.shape
    Ce = params['w1'].shape[1]
    y = jnp.einsum('nhwc,cd->nhwd', x, params['w1'])
    yp = jnp.pad(y, ((0, 0), (1, 1), (1, 1), (0, 0)))
    z = jnp.zeros_like(y)
    for dh in range(3):
        for dwi in range(3):
            z = z + yp[:, dh:dh + H, dwi:dwi + W, :] * \
                params['dw'][dh * 3 + dwi].reshape(1, 1, 1, Ce)
    a = z * params['bn_scale'] + params['bn_shift']
    h = a * jnp.clip(a + 3.0, 0.0, 6.0) / 6.0
    out = jnp.einsum('nhwd,dk->nhwk', h, params['w2']) + params['b2']
    if scale is not None:
        out = _bilinear_resize_align_corners(out, H * scale, W * scale)
    return jnp.transpose(out, (0, 3, 1, 2))


# --------------------------------------------------------------------------
if __name__ == "__main__":
    in_channels, expansion, n_classes = 4, 2, 16
    N, H, W = 2, 16, 16

    key = jax.random.PRNGKey(0)
    kx, kp = jax.random.split(key)
    x = jax.random.normal(kx, (N, in_channels, H, W), jnp.float32)
    params = make_params(kp, in_channels, n_classes, expansion)

    # default config: scale=None (no upsample)
    fwd = jax.jit(lambda xx: segmentation_head_forward(xx, params, scale=None))
    out = jax.block_until_ready(fwd(x))
    assert out.shape == (N, n_classes, H, W), out.shape
    assert bool(jnp.all(jnp.isfinite(out)))
    ref = reference_forward(x, params, scale=None)
    err = float(jnp.max(jnp.abs(out - ref)))
    assert bool(jnp.allclose(out, ref, atol=2e-2, rtol=2e-2)), err

    # optional upsample path (scale=2, bilinear align_corners=True)
    fwd2 = jax.jit(lambda xx: segmentation_head_forward(xx, params, scale=2))
    out2 = jax.block_until_ready(fwd2(x))
    assert out2.shape == (N, n_classes, 2 * H, 2 * W), out2.shape
    assert bool(jnp.all(jnp.isfinite(out2)))
    ref2 = reference_forward(x, params, scale=2)
    assert bool(jnp.allclose(out2, ref2, atol=2e-2, rtol=2e-2))

    print("KERNEL_OK")
</pallas_src>

<mosaic_0001>
module attributes {stable_mosaic.version = 11 : i64} {
  func.func @_seghead_kernel(%arg0: i32, %arg1: i32, %arg2: memref<1x8x24x4xbf16, #tpu.memory_space<vmem>>, %arg3: memref<1x1x24x4xbf16, #tpu.memory_space<vmem>>, %arg4: memref<1x1x24x4xbf16, #tpu.memory_space<vmem>>, %arg5: memref<4x8xbf16, #tpu.memory_space<vmem>>, %arg6: memref<9x8xf32, #tpu.memory_space<vmem>>, %arg7: memref<1x8xf32, #tpu.memory_space<vmem>>, %arg8: memref<1x8xf32, #tpu.memory_space<vmem>>, %arg9: memref<8x16xbf16, #tpu.memory_space<vmem>>, %arg10: memref<1x16xf32, #tpu.memory_space<vmem>>, %arg11: memref<1x8x16x16xf32, #tpu.memory_space<vmem>>, %arg12: memref<10x24x8xf32, #tpu.memory_space<vmem>>) attributes {dimension_semantics = [#tpu.dimension_semantics<parallel>, #tpu.dimension_semantics<parallel>], iteration_bounds = array<i64: 2, 2>, scalar_prefetch = 0 : i64, scratch_operands = 1 : i64, tpu.core_type = #tpu.core_type<tc>, window_params = [{transform_indices = @transform_0, window_bounds = array<i64: 1, 8, 24, 4>}, {transform_indices = @transform_1, window_bounds = array<i64: 1, 1, 24, 4>}, {transform_indices = @transform_2, window_bounds = array<i64: 1, 1, 24, 4>}, {pipeline_mode = #tpu.pipeline_mode<synchronous>, transform_indices = @transform_3, window_bounds = array<i64: 4, 8>}, {pipeline_mode = #tpu.pipeline_mode<synchronous>, transform_indices = @transform_4, window_bounds = array<i64: 9, 8>}, {pipeline_mode = #tpu.pipeline_mode<synchronous>, transform_indices = @transform_5, window_bounds = array<i64: 1, 8>}, {pipeline_mode = #tpu.pipeline_mode<synchronous>, transform_indices = @transform_6, window_bounds = array<i64: 1, 8>}, {pipeline_mode = #tpu.pipeline_mode<synchronous>, transform_indices = @transform_7, window_bounds = array<i64: 8, 16>}, {pipeline_mode = #tpu.pipeline_mode<synchronous>, transform_indices = @transform_8, window_bounds = array<i64: 1, 16>}, {transform_indices = @transform_9, window_bounds = array<i64: 1, 8, 16, 16>}]} {
    %c0 = arith.constant 0 : index
    %c0_0 = arith.constant 0 : index
    %0 = vector.load %arg5[%c0, %c0_0] : memref<4x8xbf16, #tpu.memory_space<vmem>>, vector<4x8xbf16>
    %c0_1 = arith.constant 0 : index
    %c0_2 = arith.constant 0 : index
    %c0_3 = arith.constant 0 : index
    %c0_4 = arith.constant 0 : index
    %1 = vector.load %arg2[%c0_1, %c0_2, %c0_3, %c0_4] : memref<1x8x24x4xbf16, #tpu.memory_space<vmem>>, vector<1x8x24x4xbf16>
    %2 = vector.shape_cast %1 : vector<1x8x24x4xbf16> to vector<8x24x4xbf16>
    %3 = vector.shape_cast %2 : vector<8x24x4xbf16> to vector<192x4xbf16>
    %cst = arith.constant dense<0.000000e+00> : vector<192x8xf32>
    %4 = tpu.matmul %3, %0, %cst {dimension_numbers = #tpu.dot_dimension_numbers<[1], [0], [0], [1], [0, 0, 1, 1], [], []>} : vector<192x4xbf16>, vector<4x8xbf16>, vector<192x8xf32> -> vector<192x8xf32>
    %5 = vector.shape_cast %4 : vector<192x8xf32> to vector<8x24x8xf32>
    %c0_5 = arith.constant 0 : index
    %c0_6 = arith.constant 0 : index
    %c0_7 = arith.constant 0 : index
    %6 = vector.load %arg12[%c0_5, %c0_6, %c0_7] : memref<10x24x8xf32, #tpu.memory_space<vmem>>, vector<8x24x8xf32>
    tpu.vector_store %arg12[%c0_5, %c0_6, %c0_7], %5 {strides = array<i32>} : memref<10x24x8xf32, #tpu.memory_space<vmem>>, vector<8x24x8xf32>,
    %c0_8 = arith.constant 0 : index
    %c0_9 = arith.constant 0 : index
    %c0_10 = arith.constant 0 : index
    %c0_11 = arith.constant 0 : index
    %7 = vector.load %arg3[%c0_8, %c0_9, %c0_10, %c0_11] : memref<1x1x24x4xbf16, #tpu.memory_space<vmem>>, vector<1x1x24x4xbf16>
    %8 = vector.shape_cast %7 : vector<1x1x24x4xbf16> to vector<24x4xbf16>
    %cst_12 = arith.constant dense<0.000000e+00> : vector<24x8xf32>
    %9 = tpu.matmul %8, %0, %cst_12 {dimension_numbers = #tpu.dot_dimension_numbers<[1], [0], [0], [1], [0, 0, 1, 1], [], []>} : vector<24x4xbf16>, vector<4x8xbf16>, vector<24x8xf32> -> vector<24x8xf32>
    %c8 = arith.constant 8 : index
    %c0_13 = arith.constant 0 : index
    %c0_14 = arith.constant 0 : index
    %10 = vector.load %arg12[%c8, %c0_13, %c0_14] : memref<10x24x8xf32, #tpu.memory_space<vmem>>, vector<1x24x8xf32>
    %11 = vector.shape_cast %10 : vector<1x24x8xf32> to vector<24x8xf32>
    %12 = vector.shape_cast %9 : vector<24x8xf32> to vector<1x24x8xf32>
    tpu.vector_store %arg12[%c8, %c0_13, %c0_14], %12 {strides = array<i32>} : memref<10x24x8xf32, #tpu.memory_space<vmem>>, vector<1x24x8xf32>,
    %c0_15 = arith.constant 0 : index
    %c0_16 = arith.constant 0 : index
    %c0_17 = arith.constant 0 : index
    %c0_18 = arith.constant 0 : index
    %13 = vector.load %arg4[%c0_15, %c0_16, %c0_17, %c0_18] : memref<1x1x24x4xbf16, #tpu.memory_space<vmem>>, vector<1x1x24x4xbf16>
    %14 = vector.shape_cast %13 : vector<1x1x24x4xbf16> to vector<24x4xbf16>
    %cst_19 = arith.constant dense<0.000000e+00> : vector<24x8xf32>
    %15 = tpu.matmul %14, %0, %cst_19 {dimension_numbers = #tpu.dot_dimension_numbers<[1], [0], [0], [1], [0, 0, 1, 1], [], []>} : vector<24x4xbf16>, vector<4x8xbf16>, vector<24x8xf32> -> vector<24x8xf32>
    %c9 = arith.constant 9 : index
    %c0_20 = arith.constant 0 : index
    %c0_21 = arith.constant 0 : index
    %16 = vector.load %arg12[%c9, %c0_20, %c0_21] : memref<10x24x8xf32, #tpu.memory_space<vmem>>, vector<1x24x8xf32>
    %17 = vector.shape_cast %16 : vector<1x24x8xf32> to vector<24x8xf32>
    %18 = vector.shape_cast %15 : vector<24x8xf32> to vector<1x24x8xf32>
    tpu.vector_store %arg12[%c9, %c0_20, %c0_21], %18 {strides = array<i32>} : memref<10x24x8xf32, #tpu.memory_space<vmem>>, vector<1x24x8xf32>,
    %c0_22 = arith.constant 0 : index
    %c0_23 = arith.constant 0 : index
    %19 = vector.load %arg6[%c0_22, %c0_23] : memref<9x8xf32, #tpu.memory_space<vmem>>, vector<9x8xf32>
    %cst_24 = arith.constant 0.000000e+00 : f32
    %20 = vector.broadcast %cst_24 : f32 to vector<8x16x8xf32>
    %c0_25 = arith.constant 0 : index
    %c0_26 = arith.constant 0 : index
    %c0_27 = arith.constant 0 : index
    %21 = vector.load %arg12[%c0_25, %c0_26, %c0_27] : memref<10x24x8xf32, #tpu.memory_space<vmem>>, vector<8x24x8xf32>
    %22 = vector.extract_strided_slice %19 {offsets = [0, 0], sizes = [1, 8], strides = [1, 1]} : vector<9x8xf32> to vector<1x8xf32>
    %23 = vector.shape_cast %22 : vector<1x8xf32> to vector<8xf32>
    %24 = vector.shape_cast %23 : vector<8xf32> to vector<1x1x8xf32>
    %25 = vector.extract_strided_slice %21 {offsets = [0, 0, 0], sizes = [8, 16, 8], strides = [1, 1, 1]} : vector<8x24x8xf32> to vector<8x16x8xf32>
    %26 = vector.broadcast %24 : vector<1x1x8xf32> to vector<8x16x8xf32>
    %27 = arith.mulf %25, %26 : vector<8x16x8xf32>
    %28 = arith.addf %20, %27 : vector<8x16x8xf32>
    %29 = vector.extract_strided_slice %19 {offsets = [1, 0], sizes = [1, 8], strides = [1, 1]} : vector<9x8xf32> to vector<1x8xf32>
    %30 = vector.shape_cast %29 : vector<1x8xf32> to vector<8xf32>
    %31 = vector.shape_cast %30 : vector<8xf32> to vector<1x1x8xf32>
    %32 = vector.extract_strided_slice %21 {offsets = [0, 1, 0], sizes = [8, 16, 8], strides = [1, 1, 1]} : vector<8x24x8xf32> to vector<8x16x8xf32>
    %33 = vector.broadcast %31 : vector<1x1x8xf32> to vector<8x16x8xf32>
    %34 = arith.mulf %32, %33 : vector<8x16x8xf32>
    %35 = arith.addf %28, %34 : vector<8x16x8xf32>
    %36 = vector.extract_strided_slice %19 {offsets = [2, 0], sizes = [1, 8], strides = [1, 1]} : vector<9x8xf32> to vector<1x8xf32>
    %37 = vector.shape_cast %36 : vector<1x8xf32> to vector<8xf32>
    %38 = vector.shape_cast %37 : vector<8xf32> to vector<1x1x8xf32>
    %39 = vector.extract_strided_slice %21 {offsets = [0, 2, 0], sizes = [8, 16, 8], strides = [1, 1, 1]} : vector<8x24x8xf32> to vector<8x16x8xf32>
    %40 = vector.broadcast %38 : vector<1x1x8xf32> to vector<8x16x8xf32>
    %41 = arith.mulf %39, %40 : vector<8x16x8xf32>
    %42 = arith.addf %35, %41 : vector<8x16x8xf32>
    %c1 = arith.constant 1 : index
    %c0_28 = arith.constant 0 : index
    %c0_29 = arith.constant 0 : index
    %43 = vector.load %arg12[%c1, %c0_28, %c0_29] : memref<10x24x8xf32, #tpu.memory_space<vmem>>, vector<8x24x8xf32>
    %44 = vector.extract_strided_slice %19 {offsets = [3, 0], sizes = [1, 8], strides = [1, 1]} : vector<9x8xf32> to vector<1x8xf32>
    %45 = vector.shape_cast %44 : vector<1x8xf32> to vector<8xf32>
    %46 = vector.shape_cast %45 : vector<8xf32> to vector<1x1x8xf32>
    %47 = vector.extract_strided_slice %43 {offsets = [0, 0, 0], sizes = [8, 16, 8], strides = [1, 1, 1]} : vector<8x24x8xf32> to vector<8x16x8xf32>
    %48 = vector.broadcast %46 : vector<1x1x8xf32> to vector<8x16x8xf32>
    %49 = arith.mulf %47, %48 : vector<8x16x8xf32>
    %50 = arith.addf %42, %49 : vector<8x16x8xf32>
    %51 = vector.extract_strided_slice %19 {offsets = [4, 0], sizes = [1, 8], strides = [1, 1]} : vector<9x8xf32> to vector<1x8xf32>
    %52 = vector.shape_cast %51 : vector<1x8xf32> to vector<8xf32>
    %53 = vector.shape_cast %52 : vector<8xf32> to vector<1x1x8xf32>
    %54 = vector.extract_strided_slice %43 {offsets = [0, 1, 0], sizes = [8, 16, 8], strides = [1, 1, 1]} : vector<8x24x8xf32> to vector<8x16x8xf32>
    %55 = vector.broadcast %53 : vector<1x1x8xf32> to vector<8x16x8xf32>
    %56 = arith.mulf %54, %55 : vector<8x16x8xf32>
    %57 = arith.addf %50, %56 : vector<8x16x8xf32>
    %58 = vector.extract_strided_slice %19 {offsets = [5, 0], sizes = [1, 8], strides = [1, 1]} : vector<9x8xf32> to vector<1x8xf32>
    %59 = vector.shape_cast %58 : vector<1x8xf32> to vector<8xf32>
    %60 = vector.shape_cast %59 : vector<8xf32> to vector<1x1x8xf32>
    %61 = vector.extract_strided_slice %43 {offsets = [0, 2, 0], sizes = [8, 16, 8], strides = [1, 1, 1]} : vector<8x24x8xf32> to vector<8x16x8xf32>
    %62 = vector.broadcast %60 : vector<1x1x8xf32> to vector<8x16x8xf32>
    %63 = arith.mulf %61, %62 : vector<8x16x8xf32>
    %64 = arith.addf %57, %63 : vector<8x16x8xf32>
    %c2 = arith.constant 2 : index
    %c0_30 = arith.constant 0 : index
    %c0_31 = arith.constant 0 : index
    %65 = vector.load %arg12[%c2, %c0_30, %c0_31] : memref<10x24x8xf32, #tpu.memory_space<vmem>>, vector<8x24x8xf32>
    %66 = vector.extract_strided_slice %19 {offsets = [6, 0], sizes = [1, 8], strides = [1, 1]} : vector<9x8xf32> to vector<1x8xf32>
    %67 = vector.shape_cast %66 : vector<1x8xf32> to vector<8xf32>
    %68 = vector.shape_cast %67 : vector<8xf32> to vector<1x1x8xf32>
    %69 = vector.extract_strided_slice %65 {offsets = [0, 0, 0], sizes = [8, 16, 8], strides = [1, 1, 1]} : vector<8x24x8xf32> to vector<8x16x8xf32>
    %70 = vector.broadcast %68 : vector<1x1x8xf32> to vector<8x16x8xf32>
    %71 = arith.mulf %69, %70 : vector<8x16x8xf32>
    %72 = arith.addf %64, %71 : vector<8x16x8xf32>
    %73 = vector.extract_strided_slice %19 {offsets = [7, 0], sizes = [1, 8], strides = [1, 1]} : vector<9x8xf32> to vector<1x8xf32>
    %74 = vector.shape_cast %73 : vector<1x8xf32> to vector<8xf32>
    %75 = vector.shape_cast %74 : vector<8xf32> to vector<1x1x8xf32>
    %76 = vector.extract_strided_slice %65 {offsets = [0, 1, 0], sizes = [8, 16, 8], strides = [1, 1, 1]} : vector<8x24x8xf32> to vector<8x16x8xf32>
    %77 = vector.broadcast %75 : vector<1x1x8xf32> to vector<8x16x8xf32>
    %78 = arith.mulf %76, %77 : vector<8x16x8xf32>
    %79 = arith.addf %72, %78 : vector<8x16x8xf32>
    %80 = vector.extract_strided_slice %19 {offsets = [8, 0], sizes = [1, 8], strides = [1, 1]} : vector<9x8xf32> to vector<1x8xf32>
    %81 = vector.shape_cast %80 : vector<1x8xf32> to vector<8xf32>
    %82 = vector.shape_cast %81 : vector<8xf32> to vector<1x1x8xf32>
    %83 = vector.extract_strided_slice %65 {offsets = [0, 2, 0], sizes = [8, 16, 8], strides = [1, 1, 1]} : vector<8x24x8xf32> to vector<8x16x8xf32>
    %84 = vector.broadcast %82 : vector<1x1x8xf32> to vector<8x16x8xf32>
    %85 = arith.mulf %83, %84 : vector<8x16x8xf32>
    %86 = arith.addf %79, %85 : vector<8x16x8xf32>
    %c0_32 = arith.constant 0 : index
    %c0_33 = arith.constant 0 : index
    %87 = vector.load %arg7[%c0_32, %c0_33] : memref<1x8xf32, #tpu.memory_space<vmem>>, vector<1x8xf32>
    %88 = vector.shape_cast %87 : vector<1x8xf32> to vector<1x1x8xf32>
    %89 = vector.broadcast %88 : vector<1x1x8xf32> to vector<8x16x8xf32>
    %90 = arith.mulf %86, %89 : vector<8x16x8xf32>
    %c0_34 = arith.constant 0 : index
    %c0_35 = arith.constant 0 : index
    %91 = vector.load %arg8[%c0_34, %c0_35] : memref<1x8xf32, #tpu.memory_space<vmem>>, vector<1x8xf32>
    %92 = vector.shape_cast %91 : vector<1x8xf32> to vector<1x1x8xf32>
    %93 = vector.broadcast %92 : vector<1x1x8xf32> to vector<8x16x8xf32>
    %94 = arith.addf %90, %93 : vector<8x16x8xf32>
    %cst_36 = arith.constant 3.000000e+00 : f32
    %95 = vector.broadcast %cst_36 : f32 to vector<8x16x8xf32>
    %96 = arith.addf %94, %95 : vector<8x16x8xf32>
    %cst_37 = arith.constant 0.000000e+00 : f32
    %cst_38 = arith.constant 6.000000e+00 : f32
    %97 = vector.broadcast %cst_37 : f32 to vector<8x16x8xf32>
    %98 = arith.maximumf %97, %96 : vector<8x16x8xf32>
    %99 = vector.broadcast %cst_38 : f32 to vector<8x16x8xf32>
    %100 = arith.minimumf %99, %98 : vector<8x16x8xf32>
    %101 = arith.mulf %94, %100 : vector<8x16x8xf32>
    %cst_39 = arith.constant 0.166666672 : f32
    %102 = vector.broadcast %cst_39 : f32 to vector<8x16x8xf32>
    %103 = arith.mulf %101, %102 : vector<8x16x8xf32>
    %104 = vector.shape_cast %103 : vector<8x16x8xf32> to vector<128x8xf32>
    %105 = arith.truncf %104 : vector<128x8xf32> to vector<128x8xbf16>
    %c0_40 = arith.constant 0 : index
    %c0_41 = arith.constant 0 : index
    %106 = vector.load %arg9[%c0_40, %c0_41] : memref<8x16xbf16, #tpu.memory_space<vmem>>, vector<8x16xbf16>
    %cst_42 = arith.constant dense<0.000000e+00> : vector<128x16xf32>
    %107 = tpu.matmul %105, %106, %cst_42 {dimension_numbers = #tpu.dot_dimension_numbers<[1], [0], [0], [1], [0, 0, 1, 1], [], []>} : vector<128x8xbf16>, vector<8x16xbf16>, vector<128x16xf32> -> vector<128x16xf32>
    %c0_43 = arith.constant 0 : index
    %c0_44 = arith.constant 0 : index
    %108 = vector.load %arg10[%c0_43, %c0_44] : memref<1x16xf32, #tpu.memory_space<vmem>>, vector<1x16xf32>
    %109 = vector.broadcast %108 : vector<1x16xf32> to vector<128x16xf32>
    %110 = arith.addf %107, %109 : vector<128x16xf32>
    %111 = vector.shape_cast %110 : vector<128x16xf32> to vector<8x16x16xf32>
    %c0_45 = arith.constant 0 : index
    %c0_46 = arith.constant 0 : index
    %c0_47 = arith.constant 0 : index
    %c0_48 = arith.constant 0 : index
    %112 = vector.load %arg11[%c0_45, %c0_46, %c0_47, %c0_48] : memref<1x8x16x16xf32, #tpu.memory_space<vmem>>, vector<1x8x16x16xf32>
    %113 = vector.shape_cast %112 : vector<1x8x16x16xf32> to vector<8x16x16xf32>
    %114 = vector.shape_cast %111 : vector<8x16x16xf32> to vector<1x8x16x16xf32>
    tpu.vector_store %arg11[%c0_45, %c0_46, %c0_47, %c0_48], %114 {strides = array<i32>} : memref<1x8x16x16xf32, #tpu.memory_space<vmem>>, vector<1x8x16x16xf32>,
    return
  }
  func.func @transform_0(%arg0: i32, %arg1: i32) -> (i32, i32, i32, i32) {
    %c0_i32 = arith.constant 0 : i32
    %c0_i32_0 = arith.constant 0 : i32
    %c0_i32_1 = arith.constant 0 : i32
    return %arg0, %arg1, %c0_i32, %c0_i32_0 : i32, i32, i32, i32
  }
  func.func @transform_1(%arg0: i32, %arg1: i32) -> (i32, i32, i32, i32) {
    %c8_i32 = arith.constant 8 : i32
    %0 = arith.muli %arg1, %c8_i32 : i32
    %c8_i32_0 = arith.constant 8 : i32
    %1 = arith.addi %0, %c8_i32_0 : i32
    %c0_i32 = arith.constant 0 : i32
    %c0_i32_1 = arith.constant 0 : i32
    %c0_i32_2 = arith.constant 0 : i32
    return %arg0, %1, %c0_i32, %c0_i32_1 : i32, i32, i32, i32
  }
  func.func @transform_2(%arg0: i32, %arg1: i32) -> (i32, i32, i32, i32) {
    %c8_i32 = arith.constant 8 : i32
    %0 = arith.muli %arg1, %c8_i32 : i32
    %c8_i32_0 = arith.constant 8 : i32
    %1 = arith.addi %0, %c8_i32_0 : i32
    %c1_i32 = arith.constant 1 : i32
    %2 = arith.addi %1, %c1_i32 : i32
    %c0_i32 = arith.constant 0 : i32
    %c0_i32_1 = arith.constant 0 : i32
    %c0_i32_2 = arith.constant 0 : i32
    return %arg0, %2, %c0_i32, %c0_i32_1 : i32, i32, i32, i32
  }
  func.func @transform_3(%arg0: i32, %arg1: i32) -> (i32, i32) {
    %c0_i32 = arith.constant 0 : i32
    %c0_i32_0 = arith.constant 0 : i32
    %c0_i32_1 = arith.constant 0 : i32
    return %c0_i32, %c0_i32_0 : i32, i32
  }
  func.func @transform_4(%arg0: i32, %arg1: i32) -> (i32, i32) {
    %c0_i32 = arith.constant 0 : i32
    %c0_i32_0 = arith.constant 0 : i32
    %c0_i32_1 = arith.constant 0 : i32
    return %c0_i32, %c0_i32_0 : i32, i32
  }
  func.func @transform_5(%arg0: i32, %arg1: i32) -> (i32, i32) {
    %c0_i32 = arith.constant 0 : i32
    %c0_i32_0 = arith.constant 0 : i32
    %c0_i32_1 = arith.constant 0 : i32
    return %c0_i32, %c0_i32_0 : i32, i32
  }
  func.func @transform_6(%arg0: i32, %arg1: i32) -> (i32, i32) {
    %c0_i32 = arith.constant 0 : i32
    %c0_i32_0 = arith.constant 0 : i32
    %c0_i32_1 = arith.constant 0 : i32
    return %c0_i32, %c0_i32_0 : i32, i32
  }
  func.func @transform_7(%arg0: i32, %arg1: i32) -> (i32, i32) {
    %c0_i32 = arith.constant 0 : i32
    %c0_i32_0 = arith.constant 0 : i32
    %c0_i32_1 = arith.constant 0 : i32
    return %c0_i32, %c0_i32_0 : i32, i32
  }
  func.func @transform_8(%arg0: i32, %arg1: i32) -> (i32, i32) {
    %c0_i32 = arith.constant 0 : i32
    %c0_i32_0 = arith.constant 0 : i32
    %c0_i32_1 = arith.constant 0 : i32
    return %c0_i32, %c0_i32_0 : i32, i32
  }
  func.func @transform_9(%arg0: i32, %arg1: i32) -> (i32, i32, i32, i32) {
    %c0_i32 = arith.constant 0 : i32
    %c0_i32_0 = arith.constant 0 : i32
    %c0_i32_1 = arith.constant 0 : i32
    return %arg0, %arg1, %c0_i32, %c0_i32_0 : i32, i32, i32, i32
  }
}

</mosaic_0001>

<llo_original>
// kernel: _lambda_.1
$region0: #{_lambda_.1}
  #allocation0 [shape = 'u32[]', space=smem, size = 0x4, offset = 0x4, fixed_abs, tag = 'smem constant byte address 0x4 - core index']
  #allocation1 [shape = 'u32[144,128]{1,0:T(1,128)}', space=vmem, size = 0x12000, scoped, tag = 'internal scratch']
  #allocation2 [shape = 'f32[10,24,8]{2,1,0:T(8,128)}', space=vmem, size = 0x1e000, scoped, tag = 'scratch operand']
  %s0 = inlined_call_operand.vmem [shape: bf16[2,18,24,4], index: 0, kind: input, shape index: {}, may-alias: {0,1,2}]
  %s1 = inlined_call_operand.vmem [shape: bf16[2,18,24,4], index: 1, kind: input, shape index: {}, may-alias: {0,1,2}]
  %s2 = inlined_call_operand.vmem [shape: bf16[2,18,24,4], index: 2, kind: input, shape index: {}, may-alias: {0,1,2}]
  %s3 = inlined_call_operand.vmem [shape: bf16[4,8], index: 3, kind: input, shape index: {}]
  %s4 = inlined_call_operand.vmem [shape: f32[9,8], index: 4, kind: input, shape index: {}]
  %s5 = inlined_call_operand.vmem [shape: f32[1,8], index: 5, kind: input, shape index: {}]
  %s6 = inlined_call_operand.vmem [shape: f32[1,8], index: 6, kind: input, shape index: {}]
  %s7 = inlined_call_operand.vmem [shape: bf16[8,16], index: 7, kind: input, shape index: {}]
  %s8 = inlined_call_operand.vmem [shape: f32[1,16], index: 8, kind: input, shape index: {}]
  %s9 = inlined_call_operand.vmem [shape: f32[2,16,16,16], index: 9, kind: output, shape index: {}]
  %s10 = sld [smem:[#allocation0]]
  $region69: #{_lambda_.1} parent=0
    _
  %s12 = ssub.s32 1, %s10
  %s13 = scalar_select 0, %s12, %s10
  loop: start=0, step=1, limit=6
  $region2: #{_lambda_.1} parent=0 // loop_pre_header
    _
  $region3: #{_lambda_.1} parent=0 // loop_header
    %s15 = sphi 0, %s19
    %p16 = scmp.ge.s32.totalorder %s15, 6
    %s22 = sphi 0, %s34
    %s23 = sphi 0, %s30
    %s24 = sphi 0, %s22
    %s25 = sphi 0, %s23
    %s26 = sphi 0, %s24
    %s27 = sphi 0, %s25
    %s39 = sphi 0, %s41
    %s42 = sphi 0, %s39
    %s43 = sphi 0, %s42
    %s59 = sphi 0, %s43
    %s71 = sphi 0, %s73
    %s74 = sphi 0, %s71
    %s75 = sphi 0, %s74
    %s91 = sphi 0, %s75
    %s103 = sphi 0, %s105
    %s106 = sphi 0, %s103
    %s107 = sphi 0, %s106
    %s123 = sphi 0, %s107
    %s127 = sphi 0, %s127
    %s129 = sphi 0, %s127
    %s130 = sphi 0, %s129
    %s144 = sphi 0, %s130
    %s148 = sphi 0, %s148
    %s150 = sphi 0, %s148
    %s151 = sphi 0, %s150
    %s165 = sphi 0, %s151
    %s169 = sphi 0, %s169
    %s171 = sphi 0, %s169
    %s172 = sphi 0, %s171
    %s186 = sphi 0, %s172
    %s190 = sphi 0, %s190
    %s192 = sphi 0, %s190
    %s193 = sphi 0, %s192
    %s207 = sphi 0, %s193
    %s211 = sphi 0, %s211
    %s213 = sphi 0, %s211
    %s214 = sphi 0, %s213
    %s228 = sphi 0, %s214
    %s232 = sphi 0, %s232
    %s234 = sphi 0, %s232
    %s235 = sphi 0, %s234
    %s249 = sphi 0, %s235
    %s257 = sphi 0, %s259
    %s260 = sphi 0, %s257
    %s261 = sphi 0, %s260
    %s277 = sphi 0, %s261
  $region4: #{_lambda_.1} parent=0 // loop_header_branch
    %18 = sbr.rel (%p16) target = $region8
  $region5: #{_lambda_.1} parent=0 // loop_body
    %s20 = ssub.s32 %s15, 1
    %s21 = ssub.s32 %s15, 2
    %s28 = sadd.s32 1, %s23
    %p29 = scmp.ge.s32.totalorder %s28, 2
    %s30 = scalar_select %p29, 0, %s28
    %s31 = sadd.s32 1, %s22
    %s32 = scalar_select %p29, %s31, %s22
    %p33 = scmp.ge.s32.totalorder %s32, 2
    %s34 = scalar_select %p33, 0, %s32
    %s35 = ssub.s32 %s22, %s34
    %s36 = ssub.s32 %s23, %s30
    %s37 = sor.u32 %s35, %s36
    %p38 = scmp.eq.s32.totalorder %s37, 0
    %s40 = sadd.s32 %s39, 1
    %s41 = scalar_select %p38, %s39, %s40
    %p44 = pneg %p38
    %p45 = scmp.eq.s32.totalorder %s15, 3
    %p46 = por %p44, %p45
    %p47 = scmp.ne.s32.totalorder %s39, %s42
    %p48 = scmp.eq.s32.totalorder %s15, 0
    %p49 = por %p47, %p48
    %p50 = scmp.ne.s32.totalorder %s39, %s42
    %p51 = scmp.eq.s32.totalorder %s20, 3
    %p52 = por %p50, %p51
    %p53 = scmp.ne.s32.totalorder %s42, %s43
    %p54 = scmp.eq.s32.totalorder %s20, 0
    %p55 = por %p53, %p54
    %p56 = scmp.ne.s32.totalorder %s42, %s43
    %p57 = scmp.eq.s32.totalorder %s21, 3
    %p58 = por %p56, %p57
    %p60 = scmp.ne.s32.totalorder %s43, %s59
    %p61 = scmp.eq.s32.totalorder %s21, 0
    %p62 = por %p60, %p61
    %s63 = smul.u32 %s23, 8
    %s64 = sadd.s32 %s63, 8
    %s65 = smul.u32 %s30, 8
    %s66 = sadd.s32 %s65, 8
    %s67 = ssub.s32 %s22, %s34
    %s68 = ssub.s32 %s64, %s66
    %s69 = sor.u32 %s67, %s68
    %p70 = scmp.eq.s32.totalorder %s69, 0
    %s72 = sadd.s32 %s71, 1
    %s73 = scalar_select %p70, %s71, %s72
    %p76 = pneg %p70
    %p77 = scmp.eq.s32.totalorder %s15, 3
    %p78 = por %p76, %p77
    %p79 = scmp.ne.s32.totalorder %s71, %s74
    %p80 = scmp.eq.s32.totalorder %s15, 0
    %p81 = por %p79, %p80
    %p82 = scmp.ne.s32.totalorder %s71, %s74
    %p83 = scmp.eq.s32.totalorder %s20, 3
    %p84 = por %p82, %p83
    %p85 = scmp.ne.s32.totalorder %s74, %s75
    %p86 = scmp.eq.s32.totalorder %s20, 0
    %p87 = por %p85, %p86
    %p88 = scmp.ne.s32.totalorder %s74, %s75
    %p89 = scmp.eq.s32.totalorder %s21, 3
    %p90 = por %p88, %p89
    %p92 = scmp.ne.s32.totalorder %s75, %s91
    %p93 = scmp.eq.s32.totalorder %s21, 0
    %p94 = por %p92, %p93
    %s95 = smul.u32 %s23, 8
    %s96 = sadd.s32 %s95, 9
    %s97 = smul.u32 %s30, 8
    %s98 = sadd.s32 %s97, 9
    %s99 = ssub.s32 %s22, %s34
    %s100 = ssub.s32 %s96, %s98
    %s101 = sor.u32 %s99, %s100
    %p102 = scmp.eq.s32.totalorder %s101, 0
    %s104 = sadd.s32 %s103, 1
    %s105 = scalar_select %p102, %s103, %s104
    %p108 = pneg %p102
    %p109 = scmp.eq.s32.totalorder %s15, 3
    %p110 = por %p108, %p109
    %p111 = scmp.ne.s32.totalorder %s103, %s106
    %p112 = scmp.eq.s32.totalorder %s15, 0
    %p113 = por %p111, %p112
    %p114 = scmp.ne.s32.totalorder %s103, %s106
    %p115 = scmp.eq.s32.totalorder %s20, 3
    %p116 = por %p114, %p115
    %p117 = scmp.ne.s32.totalorder %s106, %s107
    %p118 = scmp.eq.s32.totalorder %s20, 0
    %p119 = por %p117, %p118
    %p120 = scmp.ne.s32.totalorder %s106, %s107
    %p121 = scmp.eq.s32.totalorder %s21, 3
    %p122 = por %p120, %p121
    %p124 = scmp.ne.s32.totalorder %s107, %s123
    %p125 = scmp.eq.s32.totalorder %s21, 0
    %p126 = por %p124, %p125
    %s128 = sadd.s32 %s127, 1
    %p131 = scmp.eq.s32.totalorder %s15, 3
    %p132 = scmp.ne.s32.totalorder %s127, %s129
    %p133 = scmp.eq.s32.totalorder %s15, 0
    %p134 = por %p132, %p133
    %p135 = scmp.ne.s32.totalorder %s127, %s129
    %p136 = scmp.eq.s32.totalorder %s20, 3
    %p137 = por %p135, %p136
    %p138 = scmp.ne.s32.totalorder %s129, %s130
    %p139 = scmp.eq.s32.totalorder %s20, 0
    %p140 = por %p138, %p139
    %p141 = scmp.ne.s32.totalorder %s129, %s130
    %p142 = scmp.eq.s32.totalorder %s21, 3
    %p143 = por %p141, %p142
    %p145 = scmp.ne.s32.totalorder %s130, %s144
    %p146 = scmp.eq.s32.totalorder %s21, 0
    %p147 = por %p145, %p146
    %s149 = sadd.s32 %s148, 1
    %p152 = scmp.eq.s32.totalorder %s15, 3
    %p153 = scmp.ne.s32.totalorder %s148, %s150
    %p154 = scmp.eq.s32.totalorder %s15, 0
    %p155 = por %p153, %p154
    %p156 = scmp.ne.s32.totalorder %s148, %s150
    %p157 = scmp.eq.s32.totalorder %s20, 3
    %p158 = por %p156, %p157
    %p159 = scmp.ne.s32.totalorder %s150, %s151
    %p160 = scmp.eq.s32.totalorder %s20, 0
    %p161 = por %p159, %p160
    %p162 = scmp.ne.s32.totalorder %s150, %s151
    %p163 = scmp.eq.s32.totalorder %s21, 3
    %p164 = por %p162, %p163
    %p166 = scmp.ne.s32.totalorder %s151, %s165
    %p167 = scmp.eq.s32.totalorder %s21, 0
    %p168 = por %p166, %p167
    %s170 = sadd.s32 %s169, 1
    %p173 = scmp.eq.s32.totalorder %s15, 3
    %p174 = scmp.ne.s32.totalorder %s169, %s171
    %p175 = scmp.eq.s32.totalorder %s15, 0
    %p176 = por %p174, %p175
    %p177 = scmp.ne.s32.totalorder %s169, %s171
    %p178 = scmp.eq.s32.totalorder %s20, 3
    %p179 = por %p177, %p178
    %p180 = scmp.ne.s32.totalorder %s171, %s172
    %p181 = scmp.eq.s32.totalorder %s20, 0
    %p182 = por %p180, %p181
    %p183 = scmp.ne.s32.totalorder %s171, %s172
    %p184 = scmp.eq.s32.totalorder %s21, 3
    %p185 = por %p183, %p184
    %p187 = scmp.ne.s32.totalorder %s172, %s186
    %p188 = scmp.eq.s32.totalorder %s21, 0
    %p189 = por %p187, %p188
    %s191 = sadd.s32 %s190, 1
    %p194 = scmp.eq.s32.totalorder %s15, 3
    %p195 = scmp.ne.s32.totalorder %s190, %s192
    %p196 = scmp.eq.s32.totalorder %s15, 0
    %p197 = por %p195, %p196
    %p198 = scmp.ne.s32.totalorder %s190, %s192
    %p199 = scmp.eq.s32.totalorder %s20, 3
    %p200 = por %p198, %p199
    %p201 = scmp.ne.s32.totalorder %s192, %s193
    %p202 = scmp.eq.s32.totalorder %s20, 0
    %p203 = por %p201, %p202
    %p204 = scmp.ne.s32.totalorder %s192, %s193
    %p205 = scmp.eq.s32.totalorder %s21, 3
    %p206 = por %p204, %p205
    %p208 = scmp.ne.s32.totalorder %s193, %s207
    %p209 = scmp.eq.s32.totalorder %s21, 0
    %p210 = por %p208, %p209
    %s212 = sadd.s32 %s211, 1
    %p215 = scmp.eq.s32.totalorder %s15, 3
    %p216 = scmp.ne.s32.totalorder %s211, %s213
    %p217 = scmp.eq.s32.totalorder %s15, 0
    %p218 = por %p216, %p217
    %p219 = scmp.ne.s32.totalorder %s211, %s213
    %p220 = scmp.eq.s32.totalorder %s20, 3
    %p221 = por %p219, %p220
    %p222 = scmp.ne.s32.totalorder %s213, %s214
    %p223 = scmp.eq.s32.totalorder %s20, 0
    %p224 = por %p222, %p223
    %p225 = scmp.ne.s32.totalorder %s213, %s214
    %p226 = scmp.eq.s32.totalorder %s21, 3
    %p227 = por %p225, %p226
    %p229 = scmp.ne.s32.totalorder %s214, %s228
    %p230 = scmp.eq.s32.totalorder %s21, 0
    %p231 = por %p229, %p230
    %s233 = sadd.s32 %s232, 1
    %p236 = scmp.eq.s32.totalorder %s15, 3
    %p237 = scmp.ne.s32.totalorder %s232, %s234
    %p238 = scmp.eq.s32.totalorder %s15, 0
    %p239 = por %p237, %p238
    %p240 = scmp.ne.s32.totalorder %s232, %s234
    %p241 = scmp.eq.s32.totalorder %s20, 3
    %p242 = por %p240, %p241
    %p243 = scmp.ne.s32.totalorder %s234, %s235
    %p244 = scmp.eq.s32.totalorder %s20, 0
    %p245 = por %p243, %p244
    %p246 = scmp.ne.s32.totalorder %s234, %s235
    %p247 = scmp.eq.s32.totalorder %s21, 3
    %p248 = por %p246, %p247
    %p250 = scmp.ne.s32.totalorder %s235, %s249
    %p251 = scmp.eq.s32.totalorder %s21, 0
    %p252 = por %p250, %p251
    %s253 = ssub.s32 %s22, %s34
    %s254 = ssub.s32 %s23, %s30
    %s255 = sor.u32 %s253, %s254
    %p256 = scmp.eq.s32.totalorder %s255, 0
    %s258 = sadd.s32 %s257, 1
    %s259 = scalar_select %p256, %s257, %s258
    %p262 = pneg %p256
    %p263 = scmp.eq.s32.totalorder %s15, 3
    %p264 = por %p262, %p263
    %p265 = scmp.ne.s32.totalorder %s257, %s260
    %p266 = scmp.eq.s32.totalorder %s15, 0
    %p267 = por %p265, %p266
    %p268 = scmp.ne.s32.totalorder %s257, %s260
    %p269 = scmp.eq.s32.totalorder %s20, 3
    %p270 = por %p268, %p269
    %p271 = scmp.ne.s32.totalorder %s260, %s261
    %p272 = scmp.eq.s32.totalorder %s20, 0
    %p273 = por %p271, %p272
    %p274 = scmp.ne.s32.totalorder %s260, %s261
    %p275 = scmp.eq.s32.totalorder %s21, 3
    %p276 = por %p274, %p275
    %p278 = scmp.ne.s32.totalorder %s261, %s277
    %p279 = scmp.eq.s32.totalorder %s21, 0
    %p280 = por %p278, %p279
    %p281 = scmp.le.s32.totalorder 1, %s15
    %p282 = scmp.lt.s32.totalorder %s15, 5
    %p283 = pnand %p281, %p282
    %p284 = pneg %p283
    // Predicated region
    $region9: #{_lambda_.1} parent=5 // pred_check
      _
    $region10: #{_lambda_.1} parent=5 // pred_check_branch
      %286 = sbr.rel (%p283) target = $region12
    $region11: #{_lambda_.1} parent=5 // pred_region
      %s287 = ssub.s32 %s15, 1
      // Predicated region
      $region13: #{_lambda_.1} parent=11 // pred_check
        %p288 = pneg %p140
      $region14: #{_lambda_.1} parent=11 // pred_check_branch
        %290 = sbr.rel (%p288) target = $region16
      $region15: #{_lambda_.1} parent=11 // pred_region
        _
      $region16: #{_lambda_.1} parent=11 // pred_fallthru
        _
      // Predicated region
      $region17: #{_lambda_.1} parent=11 // pred_check
        %p291 = pneg %p161
      $region18: #{_lambda_.1} parent=11 // pred_check_branch
        %293 = sbr.rel (%p291) target = $region20
      $region19: #{_lambda_.1} parent=11 // pred_region
        _
      $region20: #{_lambda_.1} parent=11 // pred_fallthru
        _
      // Predicated region
      $region21: #{_lambda_.1} parent=11 // pred_check
        %p294 = pneg %p182
      $region22: #{_lambda_.1} parent=11 // pred_check_branch
        %296 = sbr.rel (%p294) target = $region24
      $region23: #{_lambda_.1} parent=11 // pred_region
        _
      $region24: #{_lambda_.1} parent=11 // pred_fallthru
        _
      // Predicated region
      $region25: #{_lambda_.1} parent=11 // pred_check
        %p297 = pneg %p203
      $region26: #{_lambda_.1} parent=11 // pred_check_branch
        %299 = sbr.rel (%p297) target = $region28
      $region27: #{_lambda_.1} parent=11 // pred_region
        _
      $region28: #{_lambda_.1} parent=11 // pred_fallthru
        _
      // Predicated region
      $region29: #{_lambda_.1} parent=11 // pred_check
        %p300 = pneg %p224
      $region30: #{_lambda_.1} parent=11 // pred_check_branch
        %302 = sbr.rel (%p300) target = $region32
      $region31: #{_lambda_.1} parent=11 // pred_region
        _
      $region32: #{_lambda_.1} parent=11 // pred_fallthru
        _
      // Predicated region
      $region33: #{_lambda_.1} parent=11 // pred_check
        %p303 = pneg %p245
      $region34: #{_lambda_.1} parent=11 // pred_check_branch
        %305 = sbr.rel (%p303) target = $region36
      $region35: #{_lambda_.1} parent=11 // pred_region
        _
      $region36: #{_lambda_.1} parent=11 // pred_fallthru
        _
    $region12: #{_lambda_.1} parent=5 // pred_fallthru
      _
    %p306 = scmp.lt.s32.totalorder %s15, 4
    // Predicated region
    $region37: #{_lambda_.1} parent=5 // pred_check
      %p307 = pneg %p306
    $region38: #{_lambda_.1} parent=5 // pred_check_branch
      %309 = sbr.rel (%p307) target = $region40
    $region39: #{_lambda_.1} parent=5 // pred_region
      // Predicated region
      $region41: #{_lambda_.1} parent=39 // pred_check
        %p310 = pneg %p49
      $region42: #{_lambda_.1} parent=39 // pred_check_branch
        %312 = sbr.rel (%p310) target = $region44
      $region43: #{_lambda_.1} parent=39 // pred_region
        %s313 = smul.u32 8, %s23
        %s314 = ssub.s32 18, %s313
        %p315 = scmp.lt.s32.totalorder %s314, 8
        %s316 = scalar_select %p315, %s314, 8
        %s317 = smul.u32 64, %s316
        %s318 = smul.u32 %s317, 3
        %p319 = scmp.lt.s32.totalorder %s22, 1
        %s320 = scalar_select %p319, %s22, 1
        %p321 = scmp.lt.s32.totalorder %s313, 17
        %s322 = scalar_select %p321, %s313, 17
        %s323 = smul.addr %s322, 3
        %s324 = smul.addr %s320, 54
        %s325 = sadd.s32 %s323, %s324
        %s326 = smul.addr %s325, 4
        %s327 = scalar_lea.vmem %s0, %s326
        %s328 = smul.u32 8, %s23
        %s329 = ssub.s32 18, %s328
        %p330 = scmp.lt.s32.totalorder %s329, 8
        %s331 = scalar_select %p330, %s329, 8
        %s332 = smul.u32 64, %s331
        %s333 = smul.u32 %s332, 3
      $region44: #{_lambda_.1} parent=39 // pred_fallthru
        _
      // Predicated region
      $region45: #{_lambda_.1} parent=39 // pred_check
        %p334 = pneg %p81
      $region46: #{_lambda_.1} parent=39 // pred_check_branch
        %336 = sbr.rel (%p334) target = $region48
      $region47: #{_lambda_.1} parent=39 // pred_region
        %s337 = smul.u32 %s23, 8
        %s338 = sadd.s32 %s337, 8
        %p339 = scmp.lt.s32.totalorder %s22, 1
        %s340 = scalar_select %p339, %s22, 1
        %p341 = scmp.lt.s32.totalorder %s338, 17
        %s342 = scalar_select %p341, %s338, 17
        %s343 = smul.addr %s342, 3
        %s344 = smul.addr %s340, 54
        %s345 = sadd.s32 %s343, %s344
        %s346 = smul.addr %s345, 4
        %s347 = scalar_lea.vmem %s1, %s346
        %s348 = smul.u32 %s23, 8
        %s349 = sadd.s32 %s348, 8
      $region48: #{_lambda_.1} parent=39 // pred_fallthru
        _
      // Predicated region
      $region49: #{_lambda_.1} parent=39 // pred_check
        %p350 = pneg %p113
      $region50: #{_lambda_.1} parent=39 // pred_check_branch
        %352 = sbr.rel (%p350) target = $region52
      $region51: #{_lambda_.1} parent=39 // pred_region
        %s353 = smul.u32 %s23, 8
        %s354 = sadd.s32 %s353, 9
        %p355 = scmp.lt.s32.totalorder %s22, 1
        %s356 = scalar_select %p355, %s22, 1
        %p357 = scmp.lt.s32.totalorder %s354, 17
        %s358 = scalar_select %p357, %s354, 17
        %s359 = smul.addr %s358, 3
        %s360 = smul.addr %s356, 54
        %s361 = sadd.s32 %s359, %s360
        %s362 = smul.addr %s361, 4
        %s363 = scalar_lea.vmem %s2, %s362
        %s364 = smul.u32 %s23, 8
        %s365 = sadd.s32 %s364, 9
      $region52: #{_lambda_.1} parent=39 // pred_fallthru
        _
    $region40: #{_lambda_.1} parent=5 // pred_fallthru
      _
    %p366 = scmp.le.s32.totalorder 1, %s15
    %p367 = scmp.lt.s32.totalorder %s15, 5
    %p368 = pnand %p366, %p367
    %p369 = pneg %p368
    // Predicated region
    $region53: #{_lambda_.1} parent=5 // pred_check
      _
    $region54: #{_lambda_.1} parent=5 // pred_check_branch
      %371 = sbr.rel (%p368) target = $region56
    $region55: #{_lambda_.1} parent=5 // pred_region
      %s372 = ssub.s32 %s15, 1
      %s373 = smul.u32 8, %s25
      %s374 = ssub.s32 18, %s373
      %p375 = scmp.lt.s32.totalorder %s374, 8
      %s376 = scalar_select %p375, %s374, 8
      %s377 = smul.u32 64, %s376
      %s378 = smul.u32 %s377, 3
      %p379 = scmp.lt.s32.totalorder %s24, 1
      %s380 = scalar_select %p379, %s24, 1
      %p381 = scmp.lt.s32.totalorder %s373, 17
      %s382 = scalar_select %p381, %s373, 17
      %s383 = smul.addr %s382, 3
      %s384 = smul.addr %s380, 54
      %s385 = sadd.s32 %s383, %s384
      %s386 = smul.addr %s385, 4
      %s387 = scalar_lea.vmem %s0, %s386
      %p388 = pneg %p55
      %p389 = pneg %p52
      %s390 = smul.u32 %s25, 8
      %s391 = sadd.s32 %s390, 8
      %p392 = scmp.lt.s32.totalorder %s24, 1
      %s393 = scalar_select %p392, %s24, 1
      %p394 = scmp.lt.s32.totalorder %s391, 17
      %s395 = scalar_select %p394, %s391, 17
      %s396 = smul.addr %s395, 3
      %s397 = smul.addr %s393, 54
      %s398 = sadd.s32 %s396, %s397
      %s399 = smul.addr %s398, 4
      %s400 = scalar_lea.vmem %s1, %s399
      %p401 = pneg %p87
      %p402 = pneg %p84
      %s403 = smul.u32 %s25, 8
      %s404 = sadd.s32 %s403, 9
      %p405 = scmp.lt.s32.totalorder %s24, 1
      %s406 = scalar_select %p405, %s24, 1
      %p407 = scmp.lt.s32.totalorder %s404, 17
      %s408 = scalar_select %p407, %s404, 17
      %s409 = smul.addr %s408, 3
      %s410 = smul.addr %s406, 54
      %s411 = sadd.s32 %s409, %s410
      %s412 = smul.addr %s411, 4
      %s413 = scalar_lea.vmem %s2, %s412
      %p414 = pneg %p119
      %p415 = pneg %p116
      %p416 = pneg %p140
      %p417 = pneg %p137
      %p418 = pneg %p161
      %p419 = pneg %p158
      %p420 = pneg %p182
      %p421 = pneg %p179
      %p422 = pneg %p203
      %p423 = pneg %p200
      %p424 = pneg %p224
      %p425 = pneg %p221
      %p426 = pneg %p245
      %p427 = pneg %p242
      %p428 = pneg %p273
      %p429 = pneg %p270
      %s430 = smul.u32 8, %s25
      %p431 = scmp.lt.s32.totalorder %s24, 1
      %s432 = scalar_select %p431, %s24, 1
      %p433 = scmp.lt.s32.totalorder %s430, 15
      %s434 = scalar_select %p433, %s430, 15
      %s435 = smul.addr %s434, 2
      %s436 = smul.addr %s432, 32
      %s437 = sadd.s32 %s435, %s436
      %s438 = smul.addr %s437, 8
      %s439 = scalar_lea.vmem %s9, %s438
      %s440 = smul.u32 8, %s25
      %s441 = ssub.s32 18, %s440
      %p442 = scmp.lt.s32.totalorder %s441, 8
      %s443 = scalar_select %p442, %s441, 8
      %s444 = smul.u32 64, %s443
      %s445 = smul.u32 %s444, 3
      %p446 = scmp.lt.s32.totalorder %s24, 1
      %s447 = scalar_select %p446, %s24, 1
      %p448 = scmp.lt.s32.totalorder %s440, 17
      %s449 = scalar_select %p448, %s440, 17
      %s450 = smul.addr %s449, 3
      %s451 = smul.addr %s447, 54
      %s452 = sadd.s32 %s450, %s451
      %s453 = smul.addr %s452, 4
      %s454 = scalar_lea.vmem %s0, %s453
      %s455 = smul.u32 8, %s25
      %s456 = ssub.s32 18, %s455
      %p457 = scmp.lt.s32.totalorder %s456, 8
      %s458 = scalar_select %p457, %s456, 8
      %s459 = smul.u32 64, %s458
      %s460 = smul.u32 %s459, 3
      %s461 = smul.u32 %s25, 8
      %s462 = sadd.s32 %s461, 8
      %p463 = scmp.lt.s32.totalorder %s24, 1
      %s464 = scalar_select %p463, %s24, 1
      %p465 = scmp.lt.s32.totalorder %s462, 17
      %s466 = scalar_select %p465, %s462, 17
      %s467 = smul.addr %s466, 3
      %s468 = smul.addr %s464, 54
      %s469 = sadd.s32 %s467, %s468
      %s470 = smul.addr %s469, 4
      %s471 = scalar_lea.vmem %s1, %s470
      %s472 = smul.u32 %s25, 8
      %s473 = sadd.s32 %s472, 8
      %s474 = smul.u32 %s25, 8
      %s475 = sadd.s32 %s474, 9
      %p476 = scmp.lt.s32.totalorder %s24, 1
      %s477 = scalar_select %p476, %s24, 1
      %p478 = scmp.lt.s32.totalorder %s475, 17
      %s479 = scalar_select %p478, %s475, 17
      %s480 = smul.addr %s479, 3
      %s481 = smul.addr %s477, 54
      %s482 = sadd.s32 %s480, %s481
      %s483 = smul.addr %s482, 4
      %s484 = scalar_lea.vmem %s2, %s483
      %s485 = smul.u32 %s25, 8
      %s486 = sadd.s32 %s485, 9
      %s487 = smul.u32 8, %s25
      %p488 = scmp.lt.s32.totalorder %s24, 1
      %s489 = scalar_select %p488, %s24, 1
      %p490 = scmp.lt.s32.totalorder %s487, 15
      %s491 = scalar_select %p490, %s487, 15
      %s492 = smul.addr %s491, 2
      %s493 = smul.addr %s489, 32
      %s494 = sadd.s32 %s492, %s493
      %s495 = smul.addr %s494, 8
      %s496 = scalar_lea.vmem %s9, %s495
      %s497 = smul.u32 8, %s25
      %v499 = vld [vmem:[%s3] sm:$0x3]
      %v500 = vld [vmem:[%s454] sm:$0xf]
      %v501 = vld [vmem:[%s454 + $0x4] sm:$0xf]
      %v502 = vld [vmem:[%s454 + $0x8] sm:$0xf]
      %v503 = vld [vmem:[%s454 + $0xc] sm:$0xf]
      %v504 = vld [vmem:[%s454 + $0x10] sm:$0xf]
      %v505 = vld [vmem:[%s454 + $0x14] sm:$0xf]
      %v506 = vld [vmem:[%s454 + $0x18] sm:$0xf]
      %v507 = vld [vmem:[%s454 + $0x1c] sm:$0xf]
      %v508 = vld [vmem:[%s454 + $0x20] sm:$0xf]
      %v509 = vld [vmem:[%s454 + $0x24] sm:$0xf]
      %v510 = vld [vmem:[%s454 + $0x28] sm:$0xf]
      %v511 = vld [vmem:[%s454 + $0x2c] sm:$0xf]
      %v512 = vld [vmem:[%s454 + $0x30] sm:$0xf]
      %v513 = vld [vmem:[%s454 + $0x34] sm:$0xf]
      %v514 = vld [vmem:[%s454 + $0x38] sm:$0xf]
      %v515 = vld [vmem:[%s454 + $0x3c] sm:$0xf]
      %v516 = vld [vmem:[%s454 + $0x40] sm:$0xf]
      %v517 = vld [vmem:[%s454 + $0x44] sm:$0xf]
      %v518 = vld [vmem:[%s454 + $0x48] sm:$0xf]
      %v519 = vld [vmem:[%s454 + $0x4c] sm:$0xf]
      %v520 = vld [vmem:[%s454 + $0x50] sm:$0xf]
      %v521 = vld [vmem:[%s454 + $0x54] sm:$0xf]
      %v522 = vld [vmem:[%s454 + $0x58] sm:$0xf]
      %v523 = vld [vmem:[%s454 + $0x5c] sm:$0xf]
      %v548 = vunpack.c.l.b16 %v500
      %v549 = vunpack.c.l.b16 %v501
      %v550 = vunpack.c.l.b16 %v502
      %v551 = vunpack.c.l.b16 %v503
      %v552 = vunpack.c.l.b16 %v504
      %v553 = vunpack.c.l.b16 %v505
      %v554 = vunpack.c.l.b16 %v506
      %v555 = vunpack.c.l.b16 %v507
      %v556 = vunpack.c.l.b16 %v508
      %v557 = vunpack.c.l.b16 %v509
      %v558 = vunpack.c.l.b16 %v510
      %v559 = vunpack.c.l.b16 %v511
      %v560 = vunpack.c.l.b16 %v512
      %v561 = vunpack.c.l.b16 %v513
      %v562 = vunpack.c.l.b16 %v514
      %v563 = vunpack.c.l.b16 %v515
      %v564 = vunpack.c.l.b16 %v516
      %v565 = vunpack.c.l.b16 %v517
      %v566 = vunpack.c.l.b16 %v518
      %v567 = vunpack.c.l.b16 %v519
      %v568 = vunpack.c.l.b16 %v520
      %v569 = vunpack.c.l.b16 %v521
      %v570 = vunpack.c.l.b16 %v522
      %v571 = vunpack.c.l.b16 %v523
      %v572 = vpack.c.b16 %v549, %v548
      %v573 = vpack.c.b16 %v551, %v550
      %v574 = vpack.c.b16 %v553, %v552
      %v575 = vpack.c.b16 %v555, %v554
      %v576 = vpack.c.b16 %v557, %v556
      %v577 = vpack.c.b16 %v559, %v558
      %v578 = vpack.c.b16 %v561, %v560
      %v579 = vpack.c.b16 %v563, %v562
      %v580 = vpack.c.b16 %v565, %v564
      %v581 = vpack.c.b16 %v567, %v566
      %v582 = vpack.c.b16 %v569, %v568
      %v583 = vpack.c.b16 %v571, %v570
      %vm584 = vcmask 31744
      %v586 = vsel %vm584, %v572, 0
      %v589 = vsel %vm584, %v573, 0
      %v592 = vsel %vm584, %v574, 0
      %v595 = vsel %vm584, %v575, 0
      %v598 = vsel %vm584, %v576, 0
      %v601 = vsel %vm584, %v577, 0
      %v604 = vsel %vm584, %v578, 0
      %v607 = vsel %vm584, %v579, 0
      %v610 = vsel %vm584, %v580, 0
      %v613 = vsel %vm584, %v581, 0
      %v616 = vsel %vm584, %v582, 0
      %v619 = vsel %vm584, %v583, 0
      %vm621 = vcmask 1041408
      %v623 = vsel %vm621, %v499, 0
      %625 = vmatprep.subr.bf16.mxu0 0
      %626 = vmatpush1.bf16.msra.mxu0 %v623
      %627 = vmatprep.subr.bf16.mxu0 0
      %628 = vmatpush1.bf16.msra.mxu0 0
      %629 = vmatprep.subr.bf16.mxu0 0
      %630 = vmatpush1.bf16.msra.mxu0 0
      %631 = vmatprep.subr.bf16.mxu0 0
      %632 = vmatpush1.bf16.msra.mxu0 0
      %633 = vmatprep.subr.bf16.mxu0 0
      %634 = vmatpush1.bf16.msra.mxu0 0
      %635 = vmatprep.subr.bf16.mxu0 0
      %636 = vmatpush1.bf16.msra.mxu0 0
      %637 = vmatprep.subr.bf16.mxu0 0
      %638 = vmatpush1.bf16.msra.mxu0 0
      %639 = vmatprep.subr.bf16.mxu0 0
      %640 = vmatpush1.bf16.msra.mxu0 0
      %641 = vmatprep.subr.bf16.mxu0 0
      %642 = vmatpush1.bf16.msra.mxu0 0
      %643 = vmatprep.subr.bf16.mxu0 0
      %644 = vmatpush1.bf16.msra.mxu0 0
      %645 = vmatprep.subr.bf16.mxu0 0
      %646 = vmatpush1.bf16.msra.mxu0 0
      %647 = vmatprep.subr.bf16.mxu0 0
      %648 = vmatpush1.bf16.msra.mxu0 0
      %649 = vmatprep.subr.bf16.mxu0 0
      %650 = vmatpush1.bf16.msra.mxu0 0
      %651 = vmatprep.subr.bf16.mxu0 0
      %652 = vmatpush1.bf16.msra.mxu0 0
      %653 = vmatprep.subr.bf16.mxu0 0
      %654 = vmatpush1.bf16.msra.mxu0 0
      %655 = vmatprep.subr.bf16.mxu0 0
      %656 = vmatpush1.bf16.msra.mxu0 0
      %657 = vmatprep.mubr.bf16.mxu0 0
      %658 = vmatmul.mubr.bf16.gmra.mrb[0].mxu0 %v586
      %v659 = vpop.f32.mrb[0].mxu0
      %v660 = vadd.f32 0.0, %v659
      %v661 = vpop.f32.mrb[0].mxu0
      %v662 = vpop.f32.mrb[0].mxu0
      %v663 = vadd.f32 0.0, %v662
      %v664 = vpop.f32.mrb[0].mxu0
      %665 = vmatprep.mubr.bf16.mxu0 0
      %666 = vmatmul.mubr.bf16.gmra.mrb[0].mxu0 %v589
      %v667 = vpop.f32.mrb[0].mxu0
      %v668 = vadd.f32 0.0, %v667
      %v669 = vpop.f32.mrb[0].mxu0
      %v670 = vpop.f32.mrb[0].mxu0
      %v671 = vadd.f32 0.0, %v670
      %v672 = vpop.f32.mrb[0].mxu0
      %673 = vmatprep.mubr.bf16.mxu0 0
      %674 = vmatmul.mubr.bf16.gmra.mrb[0].mxu0 %v592
      %v675 = vpop.f32.mrb[0].mxu0
      %v676 = vadd.f32 0.0, %v675
      %v677 = vpop.f32.mrb[0].mxu0
      %v678 = vpop.f32.mrb[0].mxu0
      %v679 = vadd.f32 0.0, %v678
      %v680 = vpop.f32.mrb[0].mxu0
      %681 = vmatprep.mubr.bf16.mxu0 0
      %682 = vmatmul.mubr.bf16.gmra.mrb[0].mxu0 %v595
      %v683 = vpop.f32.mrb[0].mxu0
      %v684 = vadd.f32 0.0, %v683
      %v685 = vpop.f32.mrb[0].mxu0
      %v686 = vpop.f32.mrb[0].mxu0
      %v687 = vadd.f32 0.0, %v686
      %v688 = vpop.f32.mrb[0].mxu0
      %689 = vmatprep.mubr.bf16.mxu0 0
      %690 = vmatmul.mubr.bf16.gmra.mrb[0].mxu0 %v598
      %v691 = vpop.f32.mrb[0].mxu0
      %v692 = vadd.f32 0.0, %v691
      %v693 = vpop.f32.mrb[0].mxu0
      %v694 = vpop.f32.mrb[0].mxu0
      %v695 = vadd.f32 0.0, %v694
      %v696 = vpop.f32.mrb[0].mxu0
      %697 = vmatprep.mubr.bf16.mxu0 0
      %698 = vmatmul.mubr.bf16.gmra.mrb[0].mxu0 %v601
      %v699 = vpop.f32.mrb[0].mxu0
      %v700 = vadd.f32 0.0, %v699
      %v701 = vpop.f32.mrb[0].mxu0
      %v702 = vpop.f32.mrb[0].mxu0
      %v703 = vadd.f32 0.0, %v702
      %v704 = vpop.f32.mrb[0].mxu0
      %705 = vmatprep.mubr.bf16.mxu0 0
      %706 = vmatmul.mubr.bf16.gmra.mrb[0].mxu0 %v604
      %v707 = vpop.f32.mrb[0].mxu0
      %v708 = vadd.f32 0.0, %v707
      %v709 = vpop.f32.mrb[0].mxu0
      %v710 = vpop.f32.mrb[0].mxu0
      %v711 = vadd.f32 0.0, %v710
      %v712 = vpop.f32.mrb[0].mxu0
      %713 = vmatprep.mubr.bf16.mxu0 0
      %714 = vmatmul.mubr.bf16.gmra.mrb[0].mxu0 %v607
      %v715 = vpop.f32.mrb[0].mxu0
      %v716 = vadd.f32 0.0, %v715
      %v717 = vpop.f32.mrb[0].mxu0
      %v718 = vpop.f32.mrb[0].mxu0
      %v719 = vadd.f32 0.0, %v718
      %v720 = vpop.f32.mrb[0].mxu0
      %721 = vmatprep.mubr.bf16.mxu0 0
      %722 = vmatmul.mubr.bf16.gmra.mrb[0].mxu0 %v610
      %v723 = vpop.f32.mrb[0].mxu0
      %v724 = vadd.f32 0.0, %v723
      %v725 = vpop.f32.mrb[0].mxu0
      %v726 = vpop.f32.mrb[0].mxu0
      %v727 = vadd.f32 0.0, %v726
      %v728 = vpop.f32.mrb[0].mxu0
      %729 = vmatprep.mubr.bf16.mxu0 0
      %730 = vmatmul.mubr.bf16.gmra.mrb[0].mxu0 %v613
      %v731 = vpop.f32.mrb[0].mxu0
      %v732 = vadd.f32 0.0, %v731
      %v733 = vpop.f32.mrb[0].mxu0
      %v734 = vpop.f32.mrb[0].mxu0
      %v735 = vadd.f32 0.0, %v734
      %v736 = vpop.f32.mrb[0].mxu0
      %737 = vmatprep.mubr.bf16.mxu0 0
      %738 = vmatmul.mubr.bf16.gmra.mrb[0].mxu0 %v616
      %v739 = vpop.f32.mrb[0].mxu0
      %v740 = vadd.f32 0.0, %v739
      %v741 = vpop.f32.mrb[0].mxu0
      %v742 = vpop.f32.mrb[0].mxu0
      %v743 = vadd.f32 0.0, %v742
      %v744 = vpop.f32.mrb[0].mxu0
      %745 = vmatprep.mubr.bf16.mxu0 0
      %746 = vmatmul.mubr.bf16.gmra.mrb[0].mxu0 %v619
      %v747 = vpop.f32.mrb[0].mxu0
      %v748 = vadd.f32 0.0, %v747
      %v749 = vpop.f32.mrb[0].mxu0
      %v750 = vpop.f32.mrb[0].mxu0
      %v751 = vadd.f32 0.0, %v750
      %v752 = vpop.f32.mrb[0].mxu0
      %753 = vdwg.mxu0
      %vm754 = vcmask 64512
      %755 = vst.msk [vmem:[#allocation2] sm:$0xff] %vm754, %v660
      %756 = vst.msk [vmem:[#allocation2 + $0x8] sm:$0xff] %vm754, %v663
      %757 = vst.msk [vmem:[#allocation2 + $0x10] sm:$0xff] %vm754, %v668
      %758 = vst.msk [vmem:[#allocation2 + $0x18] sm:$0xff] %vm754, %v671
      %759 = vst.msk [vmem:[#allocation2 + $0x20] sm:$0xff] %vm754, %v676
      %760 = vst.msk [vmem:[#allocation2 + $0x28] sm:$0xff] %vm754, %v679
      %761 = vst.msk [vmem:[#allocation2 + $0x30] sm:$0xff] %vm754, %v684
      %762 = vst.msk [vmem:[#allocation2 + $0x38] sm:$0xff] %vm754, %v687
      %763 = vst.msk [vmem:[#allocation2 + $0x40] sm:$0xff] %vm754, %v692
      %764 = vst.msk [vmem:[#allocation2 + $0x48] sm:$0xff] %vm754, %v695
      %765 = vst.msk [vmem:[#allocation2 + $0x50] sm:$0xff] %vm754, %v700
      %766 = vst.msk [vmem:[#allocation2 + $0x58] sm:$0xff] %vm754, %v703
      %767 = vst.msk [vmem:[#allocation2 + $0x60] sm:$0xff] %vm754, %v708
      %768 = vst.msk [vmem:[#allocation2 + $0x68] sm:$0xff] %vm754, %v711
      %769 = vst.msk [vmem:[#allocation2 + $0x70] sm:$0xff] %vm754, %v716
      %770 = vst.msk [vmem:[#allocation2 + $0x78] sm:$0xff] %vm754, %v719
      %771 = vst.msk [vmem:[#allocation2 + $0x80] sm:$0xff] %vm754, %v724
      %772 = vst.msk [vmem:[#allocation2 + $0x88] sm:$0xff] %vm754, %v727
      %773 = vst.msk [vmem:[#allocation2 + $0x90] sm:$0xff] %vm754, %v732
      %774 = vst.msk [vmem:[#allocation2 + $0x98] sm:$0xff] %vm754, %v735
      %775 = vst.msk [vmem:[#allocation2 + $0xa0] sm:$0xff] %vm754, %v740
      %776 = vst.msk [vmem:[#allocation2 + $0xa8] sm:$0xff] %vm754, %v743
      %777 = vst.msk [vmem:[#allocation2 + $0xb0] sm:$0xff] %vm754, %v748
      %778 = vst.msk [vmem:[#allocation2 + $0xb8] sm:$0xff] %vm754, %v751
      %v779 = vld [vmem:[%s471] sm:$0xf]
      %v780 = vld [vmem:[%s471 + $0x4] sm:$0xf]
      %v781 = vld [vmem:[%s471 + $0x8] sm:$0xf]
      %v785 = vunpack.c.l.b16 %v779
      %v786 = vunpack.c.l.b16 %v780
      %v787 = vunpack.c.l.b16 %v781
      %v788 = vpack.c.b16 %v786, %v785
      %v789 = vpack.c.b16 %v787, %v787
      %v791 = vsel %vm584, %v788, 0
      %v794 = vsel %vm584, %v789, 0
      %796 = vmatprep.subr.bf16.mxu0 0
      %797 = vmatpush1.bf16.msra.mxu0 %v623
      %798 = vmatprep.subr.bf16.mxu0 0
      %799 = vmatpush1.bf16.msra.mxu0 0
      %800 = vmatprep.subr.bf16.mxu0 0
      %801 = vmatpush1.bf16.msra.mxu0 0
      %802 = vmatprep.subr.bf16.mxu0 0
      %803 = vmatpush1.bf16.msra.mxu0 0
      %804 = vmatprep.subr.bf16.mxu0 0
      %805 = vmatpush1.bf16.msra.mxu0 0
      %806 = vmatprep.subr.bf16.mxu0 0
      %807 = vmatpush1.bf16.msra.mxu0 0
      %808 = vmatprep.subr.bf16.mxu0 0
      %809 = vmatpush1.bf16.msra.mxu0 0
      %810 = vmatprep.subr.bf16.mxu0 0
      %811 = vmatpush1.bf16.msra.mxu0 0
      %812 = vmatprep.subr.bf16.mxu0 0
      %813 = vmatpush1.bf16.msra.mxu0 0
      %814 = vmatprep.subr.bf16.mxu0 0
      %815 = vmatpush1.bf16.msra.mxu0 0
      %816 = vmatprep.subr.bf16.mxu0 0
      %817 = vmatpush1.bf16.msra.mxu0 0
      %818 = vmatprep.subr.bf16.mxu0 0
      %819 = vmatpush1.bf16.msra.mxu0 0
      %820 = vmatprep.subr.bf16.mxu0 0
      %821 = vmatpush1.bf16.msra.mxu0 0
      %822 = vmatprep.subr.bf16.mxu0 0
      %823 = vmatpush1.bf16.msra.mxu0 0
      %824 = vmatprep.subr.bf16.mxu0 0
      %825 = vmatpush1.bf16.msra.mxu0 0
      %826 = vmatprep.subr.bf16.mxu0 0
      %827 = vmatpush1.bf16.msra.mxu0 0
      %828 = vmatprep.mubr.bf16.mxu0 0
      %829 = vmatmul.mubr.bf16.gmra.mrb[0].mxu0 %v791
      %v830 = vpop.f32.mrb[0].mxu0
      %v831 = vadd.f32 0.0, %v830
      %v832 = vpop.f32.mrb[0].mxu0
      %v833 = vpop.f32.mrb[0].mxu0
      %v834 = vadd.f32 0.0, %v833
      %v835 = vpop.f32.mrb[0].mxu0
      %836 = vmatprep.mubr.bf16.mxu0 0
      %837 = vmatmul.mubr.bf16.gmra.mrb[0].mxu0 %v794
      %v838 = vpop.f32.mrb[0].mxu0
      %v839 = vadd.f32 0.0, %v838
      %v840 = vpop.f32.mrb[0].mxu0
      %v841 = vpop.f32.mrb[0].mxu0
      %v842 = vpop.f32.mrb[0].mxu0
      %843 = vdwg.mxu0
      %s844 = scalar_lea.vmem [#allocation2], 192
      %845 = vst.msk [vmem:[%s844] sm:$0xff] %vm754, %v831
      %846 = vst.msk [vmem:[%s844 + $0x8] sm:$0xff] %vm754, %v834
      %847 = vst.msk [vmem:[%s844 + $0x10] sm:$0xff] %vm754, %v839
      %v848 = vld [vmem:[%s484] sm:$0xf]
      %v849 = vld [vmem:[%s484 + $0x4] sm:$0xf]
      %v850 = vld [vmem:[%s484 + $0x8] sm:$0xf]
      %v854 = vunpack.c.l.b16 %v848
      %v855 = vunpack.c.l.b16 %v849
      %v856 = vunpack.c.l.b16 %v850
      %v857 = vpack.c.b16 %v855, %v854
      %v858 = vpack.c.b16 %v856, %v856
      %v860 = vsel %vm584, %v857, 0
      %v863 = vsel %vm584, %v858, 0
      %865 = vmatprep.subr.bf16.mxu0 0
      %866 = vmatpush1.bf16.msra.mxu0 %v623
      %867 = vmatprep.subr.bf16.mxu0 0
      %868 = vmatpush1.bf16.msra.mxu0 0
      %869 = vmatprep.subr.bf16.mxu0 0
      %870 = vmatpush1.bf16.msra.mxu0 0
      %871 = vmatprep.subr.bf16.mxu0 0
      %872 = vmatpush1.bf16.msra.mxu0 0
      %873 = vmatprep.subr.bf16.mxu0 0
      %874 = vmatpush1.bf16.msra.mxu0 0
      %875 = vmatprep.subr.bf16.mxu0 0
      %876 = vmatpush1.bf16.msra.mxu0 0
      %877 = vmatprep.subr.bf16.mxu0 0
      %878 = vmatpush1.bf16.msra.mxu0 0
      %879 = vmatprep.subr.bf16.mxu0 0
      %880 = vmatpush1.bf16.msra.mxu0 0
      %881 = vmatprep.subr.bf16.mxu0 0
      %882 = vmatpush1.bf16.msra.mxu0 0
      %883 = vmatprep.subr.bf16.mxu0 0
      %884 = vmatpush1.bf16.msra.mxu0 0
      %885 = vmatprep.subr.bf16.mxu0 0
      %886 = vmatpush1.bf16.msra.mxu0 0
      %887 = vmatprep.subr.bf16.mxu0 0
      %888 = vmatpush1.bf16.msra.mxu0 0
      %889 = vmatprep.subr.bf16.mxu0 0
      %890 = vmatpush1.bf16.msra.mxu0 0
      %891 = vmatprep.subr.bf16.mxu0 0
      %892 = vmatpush1.bf16.msra.mxu0 0
      %893 = vmatprep.subr.bf16.mxu0 0
      %894 = vmatpush1.bf16.msra.mxu0 0
      %895 = vmatprep.subr.bf16.mxu0 0
      %896 = vmatpush1.bf16.msra.mxu0 0
      %897 = vmatprep.mubr.bf16.mxu0 0
      %898 = vmatmul.mubr.bf16.gmra.mrb[0].mxu0 %v860
      %v899 = vpop.f32.mrb[0].mxu0
      %v900 = vadd.f32 0.0, %v899
      %v901 = vpop.f32.mrb[0].mxu0
      %v902 = vpop.f32.mrb[0].mxu0
      %v903 = vadd.f32 0.0, %v902
      %v904 = vpop.f32.mrb[0].mxu0
      %905 = vmatprep.mubr.bf16.mxu0 0
      %906 = vmatmul.mubr.bf16.gmra.mrb[0].mxu0 %v863
      %v907 = vpop.f32.mrb[0].mxu0
      %v908 = vadd.f32 0.0, %v907
      %v909 = vpop.f32.mrb[0].mxu0
      %v910 = vpop.f32.mrb[0].mxu0
      %v911 = vpop.f32.mrb[0].mxu0
      %912 = vdwg.mxu0
      %s913 = scalar_lea.vmem [#allocation2], 216
      %914 = vst.msk [vmem:[%s913] sm:$0xff] %vm754, %v900
      %915 = vst.msk [vmem:[%s913 + $0x8] sm:$0xff] %vm754, %v903
      %916 = vst.msk [vmem:[%s913 + $0x10] sm:$0xff] %vm754, %v908
      %v917 = vld [vmem:[%s4] sm:$0xff]
      %v918 = vld [vmem:[%s4 + $0x8] sm:$0x1]
      %v919 = vld [vmem:[#allocation2] sm:$0xff]
      %v920 = vld [vmem:[#allocation2 + $0x8] sm:$0xff]
      %v921 = vld [vmem:[#allocation2 + $0x10] sm:$0xff]
      %v922 = vld [vmem:[#allocation2 + $0x18] sm:$0xff]
      %v923 = vld [vmem:[#allocation2 + $0x20] sm:$0xff]
      %v924 = vld [vmem:[#allocation2 + $0x28] sm:$0xff]
      %v925 = vld [vmem:[#allocation2 + $0x30] sm:$0xff]
      %v926 = vld [vmem:[#allocation2 + $0x38] sm:$0xff]
      %v927 = vld [vmem:[#allocation2 + $0x40] sm:$0xff]
      %v928 = vld [vmem:[#allocation2 + $0x48] sm:$0xff]
      %v929 = vld [vmem:[#allocation2 + $0x50] sm:$0xff]
      %v930 = vld [vmem:[#allocation2 + $0x58] sm:$0xff]
      %v931 = vld [vmem:[#allocation2 + $0x60] sm:$0xff]
      %v932 = vld [vmem:[#allocation2 + $0x68] sm:$0xff]
      %v933 = vld [vmem:[#allocation2 + $0x70] sm:$0xff]
      %v934 = vld [vmem:[#allocation2 + $0x78] sm:$0xff]
      %v935 = vld [vmem:[#allocation2 + $0x80] sm:$0xff]
      %v936 = vld [vmem:[#allocation2 + $0x88] sm:$0xff]
      %v937 = vld [vmem:[#allocation2 + $0x90] sm:$0xff]
      %v938 = vld [vmem:[#allocation2 + $0x98] sm:$0xff]
      %v939 = vld [vmem:[#allocation2 + $0xa0] sm:$0xff]
      %v940 = vld [vmem:[#allocation2 + $0xa8] sm:$0xff]
      %v941 = vld [vmem:[#allocation2 + $0xb0] sm:$0xff]
      %v942 = vld [vmem:[#allocation2 + $0xb8] sm:$0xff]
      %v943 = vlaneseq
      %v944 = vshrl.u32 %v943, 7
      %v945 = vsub.s32 0, %v944
      %v946 = vrot.slane %v917, %v945
      %v947 = vmul.f32 %v919, %v946
      %v948 = vmul.f32 %v920, %v946
      %v949 = vmul.f32 %v922, %v946
      %v950 = vmul.f32 %v923, %v946
      %v951 = vmul.f32 %v925, %v946
      %v952 = vmul.f32 %v926, %v946
      %v953 = vmul.f32 %v928, %v946
      %v954 = vmul.f32 %v929, %v946
      %v955 = vmul.f32 %v931, %v946
      %v956 = vmul.f32 %v932, %v946
      %v957 = vmul.f32 %v934, %v946
      %v958 = vmul.f32 %v935, %v946
      %v959 = vmul.f32 %v937, %v946
      %v960 = vmul.f32 %v938, %v946
      %v961 = vmul.f32 %v940, %v946
      %v962 = vmul.f32 %v941, %v946
      %v963 = vadd.f32 %v947, 0.0
      %v964 = vadd.f32 %v948, 0.0
      %v965 = vadd.f32 %v949, 0.0
      %v966 = vadd.f32 %v950, 0.0
      %v967 = vadd.f32 %v951, 0.0
      %v968 = vadd.f32 %v952, 0.0
      %v969 = vadd.f32 %v953, 0.0
      %v970 = vadd.f32 %v954, 0.0
      %v971 = vadd.f32 %v955, 0.0
      %v972 = vadd.f32 %v956, 0.0
      %v973 = vadd.f32 %v957, 0.0
      %v974 = vadd.f32 %v958, 0.0
      %v975 = vadd.f32 %v959, 0.0
      %v976 = vadd.f32 %v960, 0.0
      %v977 = vadd.f32 %v961, 0.0
      %v978 = vadd.f32 %v962, 0.0
      %v979 = vlaneseq
      %v980 = vshrl.u32 %v979, 7
      %v981 = vsub.s32 1, %v980
      %v982 = vrot.slane %v917, %v981
      %v983 = vmul.f32 %v919, %v982
      %v984 = vmul.f32 %v920, %v982
      %v985 = vmul.f32 %v921, %v982
      %v986 = vmul.f32 %v922, %v982
      %v987 = vmul.f32 %v923, %v982
      %v988 = vmul.f32 %v924, %v982
      %v989 = vmul.f32 %v925, %v982
      %v990 = vmul.f32 %v926, %v982
      %v991 = vmul.f32 %v927, %v982
      %v992 = vmul.f32 %v928, %v982
      %v993 = vmul.f32 %v929, %v982
      %v994 = vmul.f32 %v930, %v982
      %v995 = vmul.f32 %v931, %v982
      %v996 = vmul.f32 %v932, %v982
      %v997 = vmul.f32 %v933, %v982
      %v998 = vmul.f32 %v934, %v982
      %v999 = vmul.f32 %v935, %v982
      %v1000 = vmul.f32 %v936, %v982
      %v1001 = vmul.f32 %v937, %v982
      %v1002 = vmul.f32 %v938, %v982
      %v1003 = vmul.f32 %v939, %v982
      %v1004 = vmul.f32 %v940, %v982
      %v1005 = vmul.f32 %v941, %v982
      %v1006 = vmul.f32 %v942, %v982
      %vm1031 = vcmask 1046528
      %v1032 = vrot.slane %v983, 1
      %v1033 = vrot.slane %v984, 1
      %v1034 = vsel %vm1031, %v1032, %v1033
      %v1035 = vrot.slane %v985, 1
      %v1036 = vsel %vm1031, %v1033, %v1035
      %v1037 = vrot.slane %v986, 1
      %v1038 = vrot.slane %v987, 1
      %v1039 = vsel %vm1031, %v1037, %v1038
      %v1040 = vrot.slane %v988, 1
      %v1041 = vsel %vm1031, %v1038, %v1040
      %v1042 = vrot.slane %v989, 1
      %v1043 = vrot.slane %v990, 1
      %v1044 = vsel %vm1031, %v1042, %v1043
      %v1045 = vrot.slane %v991, 1
      %v1046 = vsel %vm1031, %v1043, %v1045
      %v1047 = vrot.slane %v992, 1
      %v1048 = vrot.slane %v993, 1
      %v1049 = vsel %vm1031, %v1047, %v1048
      %v1050 = vrot.slane %v994, 1
      %v1051 = vsel %vm1031, %v1048, %v1050
      %v1052 = vrot.slane %v995, 1
      %v1053 = vrot.slane %v996, 1
      %v1054 = vsel %vm1031, %v1052, %v1053
      %v1055 = vrot.slane %v997, 1
      %v1056 = vsel %vm1031, %v1053, %v1055
      %v1057 = vrot.slane %v998, 1
      %v1058 = vrot.slane %v999, 1
      %v1059 = vsel %vm1031, %v1057, %v1058
      %v1060 = vrot.slane %v1000, 1
      %v1061 = vsel %vm1031, %v1058, %v1060
      %v1062 = vrot.slane %v1001, 1
      %v1063 = vrot.slane %v1002, 1
      %v1064 = vsel %vm1031, %v1062, %v1063
      %v1065 = vrot.slane %v1003, 1
      %v1066 = vsel %vm1031, %v1063, %v1065
      %v1067 = vrot.slane %v1004, 1
      %v1068 = vrot.slane %v1005, 1
      %v1069 = vsel %vm1031, %v1067, %v1068
      %v1070 = vrot.slane %v1006, 1
      %v1071 = vsel %vm1031, %v1068, %v1070
      %v1088 = vadd.f32 %v963, %v1034
      %v1089 = vadd.f32 %v964, %v1036
      %v1090 = vadd.f32 %v965, %v1039
      %v1091 = vadd.f32 %v966, %v1041
      %v1092 = vadd.f32 %v967, %v1044
      %v1093 = vadd.f32 %v968, %v1046
      %v1094 = vadd.f32 %v969, %v1049
      %v1095 = vadd.f32 %v970, %v1051
      %v1096 = vadd.f32 %v971, %v1054
      %v1097 = vadd.f32 %v972, %v1056
      %v1098 = vadd.f32 %v973, %v1059
      %v1099 = vadd.f32 %v974, %v1061
      %v1100 = vadd.f32 %v975, %v1064
      %v1101 = vadd.f32 %v976, %v1066
      %v1102 = vadd.f32 %v977, %v1069
      %v1103 = vadd.f32 %v978, %v1071
      %v1104 = vlaneseq
      %v1105 = vshrl.u32 %v1104, 7
      %v1106 = vsub.s32 2, %v1105
      %v1107 = vrot.slane %v917, %v1106
      %v1108 = vmul.f32 %v919, %v1107
      %v1109 = vmul.f32 %v920, %v1107
      %v1110 = vmul.f32 %v921, %v1107
      %v1111 = vmul.f32 %v922, %v1107
      %v1112 = vmul.f32 %v923, %v1107
      %v1113 = vmul.f32 %v924, %v1107
      %v1114 = vmul.f32 %v925, %v1107
      %v1115 = vmul.f32 %v926, %v1107
      %v1116 = vmul.f32 %v927, %v1107
      %v1117 = vmul.f32 %v928, %v1107
      %v1118 = vmul.f32 %v929, %v1107
      %v1119 = vmul.f32 %v930, %v1107
      %v1120 = vmul.f32 %v931, %v1107
      %v1121 = vmul.f32 %v932, %v1107
      %v1122 = vmul.f32 %v933, %v1107
      %v1123 = vmul.f32 %v934, %v1107
      %v1124 = vmul.f32 %v935, %v1107
      %v1125 = vmul.f32 %v936, %v1107
      %v1126 = vmul.f32 %v937, %v1107
      %v1127 = vmul.f32 %v938, %v1107
      %v1128 = vmul.f32 %v939, %v1107
      %v1129 = vmul.f32 %v940, %v1107
      %v1130 = vmul.f32 %v941, %v1107
      %v1131 = vmul.f32 %v942, %v1107
      %vm1156 = vcmask 1045504
      %v1157 = vrot.slane %v1108, 2
      %v1158 = vrot.slane %v1109, 2
      %v1159 = vsel %vm1156, %v1157, %v1158
      %v1160 = vrot.slane %v1110, 2
      %v1161 = vsel %vm1156, %v1158, %v1160
      %v1162 = vrot.slane %v1111, 2
      %v1163 = vrot.slane %v1112, 2
      %v1164 = vsel %vm1156, %v1162, %v1163
      %v1165 = vrot.slane %v1113, 2
      %v1166 = vsel %vm1156, %v1163, %v1165
      %v1167 = vrot.slane %v1114, 2
      %v1168 = vrot.slane %v1115, 2
      %v1169 = vsel %vm1156, %v1167, %v1168
      %v1170 = vrot.slane %v1116, 2
      %v1171 = vsel %vm1156, %v1168, %v1170
      %v1172 = vrot.slane %v1117, 2
      %v1173 = vrot.slane %v1118, 2
      %v1174 = vsel %vm1156, %v1172, %v1173
      %v1175 = vrot.slane %v1119, 2
      %v1176 = vsel %vm1156, %v1173, %v1175
      %v1177 = vrot.slane %v1120, 2
      %v1178 = vrot.slane %v1121, 2
      %v1179 = vsel %vm1156, %v1177, %v1178
      %v1180 = vrot.slane %v1122, 2
      %v1181 = vsel %vm1156, %v1178, %v1180
      %v1182 = vrot.slane %v1123, 2
      %v1183 = vrot.slane %v1124, 2
      %v1184 = vsel %vm1156, %v1182, %v1183
      %v1185 = vrot.slane %v1125, 2
      %v1186 = vsel %vm1156, %v1183, %v1185
      %v1187 = vrot.slane %v1126, 2
      %v1188 = vrot.slane %v1127, 2
      %v1189 = vsel %vm1156, %v1187, %v1188
      %v1190 = vrot.slane %v1128, 2
      %v1191 = vsel %vm1156, %v1188, %v1190
      %v1192 = vrot.slane %v1129, 2
      %v1193 = vrot.slane %v1130, 2
      %v1194 = vsel %vm1156, %v1192, %v1193
      %v1195 = vrot.slane %v1131, 2
      %v1196 = vsel %vm1156, %v1193, %v1195
      %v1213 = vadd.f32 %v1088, %v1159
      %v1214 = vadd.f32 %v1089, %v1161
      %v1215 = vadd.f32 %v1090, %v1164
      %v1216 = vadd.f32 %v1091, %v1166
      %v1217 = vadd.f32 %v1092, %v1169
      %v1218 = vadd.f32 %v1093, %v1171
      %v1219 = vadd.f32 %v1094, %v1174
      %v1220 = vadd.f32 %v1095, %v1176
      %v1221 = vadd.f32 %v1096, %v1179
      %v1222 = vadd.f32 %v1097, %v1181
      %v1223 = vadd.f32 %v1098, %v1184
      %v1224 = vadd.f32 %v1099, %v1186
      %v1225 = vadd.f32 %v1100, %v1189
      %v1226 = vadd.f32 %v1101, %v1191
      %v1227 = vadd.f32 %v1102, %v1194
      %v1228 = vadd.f32 %v1103, %v1196
      %s1229 = scalar_lea.vmem [#allocation2], 24
      %v1230 = vld [vmem:[%s1229] sm:$0xff]
      %v1231 = vld [vmem:[%s1229 + $0x8] sm:$0xff]
      %v1232 = vld [vmem:[%s1229 + $0x10] sm:$0xff]
      %v1233 = vld [vmem:[%s1229 + $0x18] sm:$0xff]
      %v1234 = vld [vmem:[%s1229 + $0x20] sm:$0xff]
      %v1235 = vld [vmem:[%s1229 + $0x28] sm:$0xff]
      %v1236 = vld [vmem:[%s1229 + $0x30] sm:$0xff]
      %v1237 = vld [vmem:[%s1229 + $0x38] sm:$0xff]
      %v1238 = vld [vmem:[%s1229 + $0x40] sm:$0xff]
      %v1239 = vld [vmem:[%s1229 + $0x48] sm:$0xff]
      %v1240 = vld [vmem:[%s1229 + $0x50] sm:$0xff]
      %v1241 = vld [vmem:[%s1229 + $0x58] sm:$0xff]
      %v1242 = vld [vmem:[%s1229 + $0x60] sm:$0xff]
      %v1243 = vld [vmem:[%s1229 + $0x68] sm:$0xff]
      %v1244 = vld [vmem:[%s1229 + $0x70] sm:$0xff]
      %v1245 = vld [vmem:[%s1229 + $0x78] sm:$0xff]
      %v1246 = vld [vmem:[%s1229 + $0x80] sm:$0xff]
      %v1247 = vld [vmem:[%s1229 + $0x88] sm:$0xff]
      %v1248 = vld [vmem:[%s1229 + $0x90] sm:$0xff]
      %v1249 = vld [vmem:[%s1229 + $0x98] sm:$0xff]
      %v1250 = vld [vmem:[%s1229 + $0xa0] sm:$0xff]
      %v1251 = vld [vmem:[%s1229 + $0xa8] sm:$0xff]
      %v1252 = vld [vmem:[%s1229 + $0xb0] sm:$0xff]
      %v1253 = vld [vmem:[%s1229 + $0xb8] sm:$0xff]
      %v1254 = vlaneseq
      %v1255 = vshrl.u32 %v1254, 7
      %v1256 = vsub.s32 3, %v1255
      %v1257 = vrot.slane %v917, %v1256
      %v1258 = vmul.f32 %v1230, %v1257
      %v1259 = vmul.f32 %v1231, %v1257
      %v1260 = vmul.f32 %v1233, %v1257
      %v1261 = vmul.f32 %v1234, %v1257
      %v1262 = vmul.f32 %v1236, %v1257
      %v1263 = vmul.f32 %v1237, %v1257
      %v1264 = vmul.f32 %v1239, %v1257
      %v1265 = vmul.f32 %v1240, %v1257
      %v1266 = vmul.f32 %v1242, %v1257
      %v1267 = vmul.f32 %v1243, %v1257
      %v1268 = vmul.f32 %v1245, %v1257
      %v1269 = vmul.f32 %v1246, %v1257
      %v1270 = vmul.f32 %v1248, %v1257
      %v1271 = vmul.f32 %v1249, %v1257
      %v1272 = vmul.f32 %v1251, %v1257
      %v1273 = vmul.f32 %v1252, %v1257
      %v1274 = vadd.f32 %v1213, %v1258
      %v1275 = vadd.f32 %v1214, %v1259
      %v1276 = vadd.f32 %v1215, %v1260
      %v1277 = vadd.f32 %v1216, %v1261
      %v1278 = vadd.f32 %v1217, %v1262
      %v1279 = vadd.f32 %v1218, %v1263
      %v1280 = vadd.f32 %v1219, %v1264
      %v1281 = vadd.f32 %v1220, %v1265
      %v1282 = vadd.f32 %v1221, %v1266
      %v1283 = vadd.f32 %v1222, %v1267
      %v1284 = vadd.f32 %v1223, %v1268
      %v1285 = vadd.f32 %v1224, %v1269
      %v1286 = vadd.f32 %v1225, %v1270
      %v1287 = vadd.f32 %v1226, %v1271
      %v1288 = vadd.f32 %v1227, %v1272
      %v1289 = vadd.f32 %v1228, %v1273
      %v1290 = vlaneseq
      %v1291 = vshrl.u32 %v1290, 7
      %v1292 = vsub.s32 4, %v1291
      %v1293 = vrot.slane %v917, %v1292
      %v1294 = vmul.f32 %v1230, %v1293
      %v1295 = vmul.f32 %v1231, %v1293
      %v1296 = vmul.f32 %v1232, %v1293
      %v1297 = vmul.f32 %v1233, %v1293
      %v1298 = vmul.f32 %v1234, %v1293
      %v1299 = vmul.f32 %v1235, %v1293
      %v1300 = vmul.f32 %v1236, %v1293
      %v1301 = vmul.f32 %v1237, %v1293
      %v1302 = vmul.f32 %v1238, %v1293
      %v1303 = vmul.f32 %v1239, %v1293
      %v1304 = vmul.f32 %v1240, %v1293
      %v1305 = vmul.f32 %v1241, %v1293
      %v1306 = vmul.f32 %v1242, %v1293
      %v1307 = vmul.f32 %v1243, %v1293
      %v1308 = vmul.f32 %v1244, %v1293
      %v1309 = vmul.f32 %v1245, %v1293
      %v1310 = vmul.f32 %v1246, %v1293
      %v1311 = vmul.f32 %v1247, %v1293
      %v1312 = vmul.f32 %v1248, %v1293
      %v1313 = vmul.f32 %v1249, %v1293
      %v1314 = vmul.f32 %v1250, %v1293
      %v1315 = vmul.f32 %v1251, %v1293
      %v1316 = vmul.f32 %v1252, %v1293
      %v1317 = vmul.f32 %v1253, %v1293
      %v1342 = vrot.slane %v1294, 1
      %v1343 = vrot.slane %v1295, 1
      %v1344 = vsel %vm1031, %v1342, %v1343
      %v1345 = vrot.slane %v1296, 1
      %v1346 = vsel %vm1031, %v1343, %v1345
      %v1347 = vrot.slane %v1297, 1
      %v1348 = vrot.slane %v1298, 1
      %v1349 = vsel %vm1031, %v1347, %v1348
      %v1350 = vrot.slane %v1299, 1
      %v1351 = vsel %vm1031, %v1348, %v1350
      %v1352 = vrot.slane %v1300, 1
      %v1353 = vrot.slane %v1301, 1
      %v1354 = vsel %vm1031, %v1352, %v1353
      %v1355 = vrot.slane %v1302, 1
      %v1356 = vsel %vm1031, %v1353, %v1355
      %v1357 = vrot.slane %v1303, 1
      %v1358 = vrot.slane %v1304, 1
      %v1359 = vsel %vm1031, %v1357, %v1358
      %v1360 = vrot.slane %v1305, 1
      %v1361 = vsel %vm1031, %v1358, %v1360
      %v1362 = vrot.slane %v1306, 1
      %v1363 = vrot.slane %v1307, 1
      %v1364 = vsel %vm1031, %v1362, %v1363
      %v1365 = vrot.slane %v1308, 1
      %v1366 = vsel %vm1031, %v1363, %v1365
      %v1367 = vrot.slane %v1309, 1
      %v1368 = vrot.slane %v1310, 1
      %v1369 = vsel %vm1031, %v1367, %v1368
      %v1370 = vrot.slane %v1311, 1
      %v1371 = vsel %vm1031, %v1368, %v1370
      %v1372 = vrot.slane %v1312, 1
      %v1373 = vrot.slane %v1313, 1
      %v1374 = vsel %vm1031, %v1372, %v1373
      %v1375 = vrot.slane %v1314, 1
      %v1376 = vsel %vm1031, %v1373, %v1375
      %v1377 = vrot.slane %v1315, 1
      %v1378 = vrot.slane %v1316, 1
      %v1379 = vsel %vm1031, %v1377, %v1378
      %v1380 = vrot.slane %v1317, 1
      %v1381 = vsel %vm1031, %v1378, %v1380
      %v1398 = vadd.f32 %v1274, %v1344
      %v1399 = vadd.f32 %v1275, %v1346
      %v1400 = vadd.f32 %v1276, %v1349
      %v1401 = vadd.f32 %v1277, %v1351
      %v1402 = vadd.f32 %v1278, %v1354
      %v1403 = vadd.f32 %v1279, %v1356
      %v1404 = vadd.f32 %v1280, %v1359
      %v1405 = vadd.f32 %v1281, %v1361
      %v1406 = vadd.f32 %v1282, %v1364
      %v1407 = vadd.f32 %v1283, %v1366
      %v1408 = vadd.f32 %v1284, %v1369
      %v1409 = vadd.f32 %v1285, %v1371
      %v1410 = vadd.f32 %v1286, %v1374
      %v1411 = vadd.f32 %v1287, %v1376
      %v1412 = vadd.f32 %v1288, %v1379
      %v1413 = vadd.f32 %v1289, %v1381
      %v1414 = vlaneseq
      %v1415 = vshrl.u32 %v1414, 7
      %v1416 = vsub.s32 5, %v1415
      %v1417 = vrot.slane %v917, %v1416
      %v1418 = vmul.f32 %v1230, %v1417
      %v1419 = vmul.f32 %v1231, %v1417
      %v1420 = vmul.f32 %v1232, %v1417
      %v1421 = vmul.f32 %v1233, %v1417
      %v1422 = vmul.f32 %v1234, %v1417
      %v1423 = vmul.f32 %v1235, %v1417
      %v1424 = vmul.f32 %v1236, %v1417
      %v1425 = vmul.f32 %v1237, %v1417
      %v1426 = vmul.f32 %v1238, %v1417
      %v1427 = vmul.f32 %v1239, %v1417
      %v1428 = vmul.f32 %v1240, %v1417
      %v1429 = vmul.f32 %v1241, %v1417
      %v1430 = vmul.f32 %v1242, %v1417
      %v1431 = vmul.f32 %v1243, %v1417
      %v1432 = vmul.f32 %v1244, %v1417
      %v1433 = vmul.f32 %v1245, %v1417
      %v1434 = vmul.f32 %v1246, %v1417
      %v1435 = vmul.f32 %v1247, %v1417
      %v1436 = vmul.f32 %v1248, %v1417
      %v1437 = vmul.f32 %v1249, %v1417
      %v1438 = vmul.f32 %v1250, %v1417
      %v1439 = vmul.f32 %v1251, %v1417
      %v1440 = vmul.f32 %v1252, %v1417
      %v1441 = vmul.f32 %v1253, %v1417
      %v1466 = vrot.slane %v1418, 2
      %v1467 = vrot.slane %v1419, 2
      %v1468 = vsel %vm1156, %v1466, %v1467
      %v1469 = vrot.slane %v1420, 2
      %v1470 = vsel %vm1156, %v1467, %v1469
      %v1471 = vrot.slane %v1421, 2
      %v1472 = vrot.slane %v1422, 2
      %v1473 = vsel %vm1156, %v1471, %v1472
      %v1474 = vrot.slane %v1423, 2
      %v1475 = vsel %vm1156, %v1472, %v1474
      %v1476 = vrot.slane %v1424, 2
      %v1477 = vrot.slane %v1425, 2
      %v1478 = vsel %vm1156, %v1476, %v1477
      %v1479 = vrot.slane %v1426, 2
      %v1480 = vsel %vm1156, %v1477, %v1479
      %v1481 = vrot.slane %v1427, 2
      %v1482 = vrot.slane %v1428, 2
      %v1483 = vsel %vm1156, %v1481, %v1482
      %v1484 = vrot.slane %v1429, 2
      %v1485 = vsel %vm1156, %v1482, %v1484
      %v1486 = vrot.slane %v1430, 2
      %v1487 = vrot.slane %v1431, 2
      %v1488 = vsel %vm1156, %v1486, %v1487
      %v1489 = vrot.slane %v1432, 2
      %v1490 = vsel %vm1156, %v1487, %v1489
      %v1491 = vrot.slane %v1433, 2
      %v1492 = vrot.slane %v1434, 2
      %v1493 = vsel %vm1156, %v1491, %v1492
      %v1494 = vrot.slane %v1435, 2
      %v1495 = vsel %vm1156, %v1492, %v1494
      %v1496 = vrot.slane %v1436, 2
      %v1497 = vrot.slane %v1437, 2
      %v1498 = vsel %vm1156, %v1496, %v1497
      %v1499 = vrot.slane %v1438, 2
      %v1500 = vsel %vm1156, %v1497, %v1499
      %v1501 = vrot.slane %v1439, 2
      %v1502 = vrot.slane %v1440, 2
      %v1503 = vsel %vm1156, %v1501, %v1502
      %v1504 = vrot.slane %v1441, 2
      %v1505 = vsel %vm1156, %v1502, %v1504
      %v1522 = vadd.f32 %v1398, %v1468
      %v1523 = vadd.f32 %v1399, %v1470
      %v1524 = vadd.f32 %v1400, %v1473
      %v1525 = vadd.f32 %v1401, %v1475
      %v1526 = vadd.f32 %v1402, %v1478
      %v1527 = vadd.f32 %v1403, %v1480
      %v1528 = vadd.f32 %v1404, %v1483
      %v1529 = vadd.f32 %v1405, %v1485
      %v1530 = vadd.f32 %v1406, %v1488
      %v1531 = vadd.f32 %v1407, %v1490
      %v1532 = vadd.f32 %v1408, %v1493
      %v1533 = vadd.f32 %v1409, %v1495
      %v1534 = vadd.f32 %v1410, %v1498
      %v1535 = vadd.f32 %v1411, %v1500
      %v1536 = vadd.f32 %v1412, %v1503
      %v1537 = vadd.f32 %v1413, %v1505
      %s1538 = scalar_lea.vmem [#allocation2], 48
      %v1539 = vld [vmem:[%s1538] sm:$0xff]
      %v1540 = vld [vmem:[%s1538 + $0x8] sm:$0xff]
      %v1541 = vld [vmem:[%s1538 + $0x10] sm:$0xff]
      %v1542 = vld [vmem:[%s1538 + $0x18] sm:$0xff]
      %v1543 = vld [vmem:[%s1538 + $0x20] sm:$0xff]
      %v1544 = vld [vmem:[%s1538 + $0x28] sm:$0xff]
      %v1545 = vld [vmem:[%s1538 + $0x30] sm:$0xff]
      %v1546 = vld [vmem:[%s1538 + $0x38] sm:$0xff]
      %v1547 = vld [vmem:[%s1538 + $0x40] sm:$0xff]
      %v1548 = vld [vmem:[%s1538 + $0x48] sm:$0xff]
      %v1549 = vld [vmem:[%s1538 + $0x50] sm:$0xff]
      %v1550 = vld [vmem:[%s1538 + $0x58] sm:$0xff]
      %v1551 = vld [vmem:[%s1538 + $0x60] sm:$0xff]
      %v1552 = vld [vmem:[%s1538 + $0x68] sm:$0xff]
      %v1553 = vld [vmem:[%s1538 + $0x70] sm:$0xff]
      %v1554 = vld [vmem:[%s1538 + $0x78] sm:$0xff]
      %v1555 = vld [vmem:[%s1538 + $0x80] sm:$0xff]
      %v1556 = vld [vmem:[%s1538 + $0x88] sm:$0xff]
      %v1557 = vld [vmem:[%s1538 + $0x90] sm:$0xff]
      %v1558 = vld [vmem:[%s1538 + $0x98] sm:$0xff]
      %v1559 = vld [vmem:[%s1538 + $0xa0] sm:$0xff]
      %v1560 = vld [vmem:[%s1538 + $0xa8] sm:$0xff]
      %v1561 = vld [vmem:[%s1538 + $0xb0] sm:$0xff]
      %v1562 = vld [vmem:[%s1538 + $0xb8] sm:$0xff]
      %v1563 = vlaneseq
      %v1564 = vshrl.u32 %v1563, 7
      %v1565 = vsub.s32 6, %v1564
      %v1566 = vrot.slane %v917, %v1565
      %v1567 = vmul.f32 %v1539, %v1566
      %v1568 = vmul.f32 %v1540, %v1566
      %v1569 = vmul.f32 %v1542, %v1566
      %v1570 = vmul.f32 %v1543, %v1566
      %v1571 = vmul.f32 %v1545, %v1566
      %v1572 = vmul.f32 %v1546, %v1566
      %v1573 = vmul.f32 %v1548, %v1566
      %v1574 = vmul.f32 %v1549, %v1566
      %v1575 = vmul.f32 %v1551, %v1566
      %v1576 = vmul.f32 %v1552, %v1566
      %v1577 = vmul.f32 %v1554, %v1566
      %v1578 = vmul.f32 %v1555, %v1566
      %v1579 = vmul.f32 %v1557, %v1566
      %v1580 = vmul.f32 %v1558, %v1566
      %v1581 = vmul.f32 %v1560, %v1566
      %v1582 = vmul.f32 %v1561, %v1566
      %v1583 = vadd.f32 %v1522, %v1567
      %v1584 = vadd.f32 %v1523, %v1568
      %v1585 = vadd.f32 %v1524, %v1569
      %v1586 = vadd.f32 %v1525, %v1570
      %v1587 = vadd.f32 %v1526, %v1571
      %v1588 = vadd.f32 %v1527, %v1572
      %v1589 = vadd.f32 %v1528, %v1573
      %v1590 = vadd.f32 %v1529, %v1574
      %v1591 = vadd.f32 %v1530, %v1575
      %v1592 = vadd.f32 %v1531, %v1576
      %v1593 = vadd.f32 %v1532, %v1577
      %v1594 = vadd.f32 %v1533, %v1578
      %v1595 = vadd.f32 %v1534, %v1579
      %v1596 = vadd.f32 %v1535, %v1580
      %v1597 = vadd.f32 %v1536, %v1581
      %v1598 = vadd.f32 %v1537, %v1582
      %v1599 = vlaneseq
      %v1600 = vshrl.u32 %v1599, 7
      %v1601 = vsub.s32 7, %v1600
      %v1602 = vrot.slane %v917, %v1601
      %v1603 = vmul.f32 %v1539, %v1602
      %v1604 = vmul.f32 %v1540, %v1602
      %v1605 = vmul.f32 %v1541, %v1602
      %v1606 = vmul.f32 %v1542, %v1602
      %v1607 = vmul.f32 %v1543, %v1602
      %v1608 = vmul.f32 %v1544, %v1602
      %v1609 = vmul.f32 %v1545, %v1602
      %v1610 = vmul.f32 %v1546, %v1602
      %v1611 = vmul.f32 %v1547, %v1602
      %v1612 = vmul.f32 %v1548, %v1602
      %v1613 = vmul.f32 %v1549, %v1602
      %v1614 = vmul.f32 %v1550, %v1602
      %v1615 = vmul.f32 %v1551, %v1602
      %v1616 = vmul.f32 %v1552, %v1602
      %v1617 = vmul.f32 %v1553, %v1602
      %v1618 = vmul.f32 %v1554, %v1602
      %v1619 = vmul.f32 %v1555, %v1602
      %v1620 = vmul.f32 %v1556, %v1602
      %v1621 = vmul.f32 %v1557, %v1602
      %v1622 = vmul.f32 %v1558, %v1602
      %v1623 = vmul.f32 %v1559, %v1602
      %v1624 = vmul.f32 %v1560, %v1602
      %v1625 = vmul.f32 %v1561, %v1602
      %v1626 = vmul.f32 %v1562, %v1602
      %v1651 = vrot.slane %v1603, 1
      %v1652 = vrot.slane %v1604, 1
      %v1653 = vsel %vm1031, %v1651, %v1652
      %v1654 = vrot.slane %v1605, 1
      %v1655 = vsel %vm1031, %v1652, %v1654
      %v1656 = vrot.slane %v1606, 1
      %v1657 = vrot.slane %v1607, 1
      %v1658 = vsel %vm1031, %v1656, %v1657
      %v1659 = vrot.slane %v1608, 1
      %v1660 = vsel %vm1031, %v1657, %v1659
      %v1661 = vrot.slane %v1609, 1
      %v1662 = vrot.slane %v1610, 1
      %v1663 = vsel %vm1031, %v1661, %v1662
      %v1664 = vrot.slane %v1611, 1
      %v1665 = vsel %vm1031, %v1662, %v1664
      %v1666 = vrot.slane %v1612, 1
      %v1667 = vrot.slane %v1613, 1
      %v1668 = vsel %vm1031, %v1666, %v1667
      %v1669 = vrot.slane %v1614, 1
      %v1670 = vsel %vm1031, %v1667, %v1669
      %v1671 = vrot.slane %v1615, 1
      %v1672 = vrot.slane %v1616, 1
      %v1673 = vsel %vm1031, %v1671, %v1672
      %v1674 = vrot.slane %v1617, 1
      %v1675 = vsel %vm1031, %v1672, %v1674
      %v1676 = vrot.slane %v1618, 1
      %v1677 = vrot.slane %v1619, 1
      %v1678 = vsel %vm1031, %v1676, %v1677
      %v1679 = vrot.slane %v1620, 1
      %v1680 = vsel %vm1031, %v1677, %v1679
      %v1681 = vrot.slane %v1621, 1
      %v1682 = vrot.slane %v1622, 1
      %v1683 = vsel %vm1031, %v1681, %v1682
      %v1684 = vrot.slane %v1623, 1
      %v1685 = vsel %vm1031, %v1682, %v1684
      %v1686 = vrot.slane %v1624, 1
      %v1687 = vrot.slane %v1625, 1
      %v1688 = vsel %vm1031, %v1686, %v1687
      %v1689 = vrot.slane %v1626, 1
      %v1690 = vsel %vm1031, %v1687, %v1689
      %v1707 = vadd.f32 %v1583, %v1653
      %v1708 = vadd.f32 %v1584, %v1655
      %v1709 = vadd.f32 %v1585, %v1658
      %v1710 = vadd.f32 %v1586, %v1660
      %v1711 = vadd.f32 %v1587, %v1663
      %v1712 = vadd.f32 %v1588, %v1665
      %v1713 = vadd.f32 %v1589, %v1668
      %v1714 = vadd.f32 %v1590, %v1670
      %v1715 = vadd.f32 %v1591, %v1673
      %v1716 = vadd.f32 %v1592, %v1675
      %v1717 = vadd.f32 %v1593, %v1678
      %v1718 = vadd.f32 %v1594, %v1680
      %v1719 = vadd.f32 %v1595, %v1683
      %v1720 = vadd.f32 %v1596, %v1685
      %v1721 = vadd.f32 %v1597, %v1688
      %v1722 = vadd.f32 %v1598, %v1690
      %v1723 = vlaneseq
      %v1724 = vshrl.u32 %v1723, 7
      %v1725 = vsub.s32 0, %v1724
      %v1726 = vrot.slane %v918, %v1725
      %v1727 = vmul.f32 %v1539, %v1726
      %v1728 = vmul.f32 %v1540, %v1726
      %v1729 = vmul.f32 %v1541, %v1726
      %v1730 = vmul.f32 %v1542, %v1726
      %v1731 = vmul.f32 %v1543, %v1726
      %v1732 = vmul.f32 %v1544, %v1726
      %v1733 = vmul.f32 %v1545, %v1726
      %v1734 = vmul.f32 %v1546, %v1726
      %v1735 = vmul.f32 %v1547, %v1726
      %v1736 = vmul.f32 %v1548, %v1726
      %v1737 = vmul.f32 %v1549, %v1726
      %v1738 = vmul.f32 %v1550, %v1726
      %v1739 = vmul.f32 %v1551, %v1726
      %v1740 = vmul.f32 %v1552, %v1726
      %v1741 = vmul.f32 %v1553, %v1726
      %v1742 = vmul.f32 %v1554, %v1726
      %v1743 = vmul.f32 %v1555, %v1726
      %v1744 = vmul.f32 %v1556, %v1726
      %v1745 = vmul.f32 %v1557, %v1726
      %v1746 = vmul.f32 %v1558, %v1726
      %v1747 = vmul.f32 %v1559, %v1726
      %v1748 = vmul.f32 %v1560, %v1726
      %v1749 = vmul.f32 %v1561, %v1726
      %v1750 = vmul.f32 %v1562, %v1726
      %v1775 = vrot.slane %v1727, 2
      %v1776 = vrot.slane %v1728, 2
      %v1777 = vsel %vm1156, %v1775, %v1776
      %v1778 = vrot.slane %v1729, 2
      %v1779 = vsel %vm1156, %v1776, %v1778
      %v1780 = vrot.slane %v1730, 2
      %v1781 = vrot.slane %v1731, 2
      %v1782 = vsel %vm1156, %v1780, %v1781
      %v1783 = vrot.slane %v1732, 2
      %v1784 = vsel %vm1156, %v1781, %v1783
      %v1785 = vrot.slane %v1733, 2
      %v1786 = vrot.slane %v1734, 2
      %v1787 = vsel %vm1156, %v1785, %v1786
      %v1788 = vrot.slane %v1735, 2
      %v1789 = vsel %vm1156, %v1786, %v1788
      %v1790 = vrot.slane %v1736, 2
      %v1791 = vrot.slane %v1737, 2
      %v1792 = vsel %vm1156, %v1790, %v1791
      %v1793 = vrot.slane %v1738, 2
      %v1794 = vsel %vm1156, %v1791, %v1793
      %v1795 = vrot.slane %v1739, 2
      %v1796 = vrot.slane %v1740, 2
      %v1797 = vsel %vm1156, %v1795, %v1796
      %v1798 = vrot.slane %v1741, 2
      %v1799 = vsel %vm1156, %v1796, %v1798
      %v1800 = vrot.slane %v1742, 2
      %v1801 = vrot.slane %v1743, 2
      %v1802 = vsel %vm1156, %v1800, %v1801
      %v1803 = vrot.slane %v1744, 2
      %v1804 = vsel %vm1156, %v1801, %v1803
      %v1805 = vrot.slane %v1745, 2
      %v1806 = vrot.slane %v1746, 2
      %v1807 = vsel %vm1156, %v1805, %v1806
      %v1808 = vrot.slane %v1747, 2
      %v1809 = vsel %vm1156, %v1806, %v1808
      %v1810 = vrot.slane %v1748, 2
      %v1811 = vrot.slane %v1749, 2
      %v1812 = vsel %vm1156, %v1810, %v1811
      %v1813 = vrot.slane %v1750, 2
      %v1814 = vsel %vm1156, %v1811, %v1813
      %v1831 = vadd.f32 %v1707, %v1777
      %v1832 = vadd.f32 %v1708, %v1779
      %v1833 = vadd.f32 %v1709, %v1782
      %v1834 = vadd.f32 %v1710, %v1784
      %v1835 = vadd.f32 %v1711, %v1787
      %v1836 = vadd.f32 %v1712, %v1789
      %v1837 = vadd.f32 %v1713, %v1792
      %v1838 = vadd.f32 %v1714, %v1794
      %v1839 = vadd.f32 %v1715, %v1797
      %v1840 = vadd.f32 %v1716, %v1799
      %v1841 = vadd.f32 %v1717, %v1802
      %v1842 = vadd.f32 %v1718, %v1804
      %v1843 = vadd.f32 %v1719, %v1807
      %v1844 = vadd.f32 %v1720, %v1809
      %v1845 = vadd.f32 %v1721, %v1812
      %v1846 = vadd.f32 %v1722, %v1814
      %v1847 = vld [vmem:[%s5] sm:$0x1]
      %v1849 = vlaneseq
      %v1850 = vshrl.u32 %v1849, 7
      %v1851 = vsub.s32 0, %v1850
      %v1852 = vrot.slane %v1847, %v1851
      %v1854 = vmul.f32 %v1831, %v1852
      %v1855 = vmul.f32 %v1832, %v1852
      %v1856 = vmul.f32 %v1833, %v1852
      %v1857 = vmul.f32 %v1834, %v1852
      %v1858 = vmul.f32 %v1835, %v1852
      %v1859 = vmul.f32 %v1836, %v1852
      %v1860 = vmul.f32 %v1837, %v1852
      %v1861 = vmul.f32 %v1838, %v1852
      %v1862 = vmul.f32 %v1839, %v1852
      %v1863 = vmul.f32 %v1840, %v1852
      %v1864 = vmul.f32 %v1841, %v1852
      %v1865 = vmul.f32 %v1842, %v1852
      %v1866 = vmul.f32 %v1843, %v1852
      %v1867 = vmul.f32 %v1844, %v1852
      %v1868 = vmul.f32 %v1845, %v1852
      %v1869 = vmul.f32 %v1846, %v1852
      %v1870 = vld [vmem:[%s6] sm:$0x1]
      %v1872 = vlaneseq
      %v1873 = vshrl.u32 %v1872, 7
      %v1874 = vsub.s32 0, %v1873
      %v1875 = vrot.slane %v1870, %v1874
      %v1877 = vadd.f32 %v1854, %v1875
      %v1878 = vadd.f32 %v1855, %v1875
      %v1879 = vadd.f32 %v1856, %v1875
      %v1880 = vadd.f32 %v1857, %v1875
      %v1881 = vadd.f32 %v1858, %v1875
      %v1882 = vadd.f32 %v1859, %v1875
      %v1883 = vadd.f32 %v1860, %v1875
      %v1884 = vadd.f32 %v1861, %v1875
      %v1885 = vadd.f32 %v1862, %v1875
      %v1886 = vadd.f32 %v1863, %v1875
      %v1887 = vadd.f32 %v1864, %v1875
      %v1888 = vadd.f32 %v1865, %v1875
      %v1889 = vadd.f32 %v1866, %v1875
      %v1890 = vadd.f32 %v1867, %v1875
      %v1891 = vadd.f32 %v1868, %v1875
      %v1892 = vadd.f32 %v1869, %v1875
      %v1893 = vadd.f32 %v1877, 3.0
      %v1894 = vadd.f32 %v1878, 3.0
      %v1895 = vadd.f32 %v1879, 3.0
      %v1896 = vadd.f32 %v1880, 3.0
      %v1897 = vadd.f32 %v1881, 3.0
      %v1898 = vadd.f32 %v1882, 3.0
      %v1899 = vadd.f32 %v1883, 3.0
      %v1900 = vadd.f32 %v1884, 3.0
      %v1901 = vadd.f32 %v1885, 3.0
      %v1902 = vadd.f32 %v1886, 3.0
      %v1903 = vadd.f32 %v1887, 3.0
      %v1904 = vadd.f32 %v1888, 3.0
      %v1905 = vadd.f32 %v1889, 3.0
      %v1906 = vadd.f32 %v1890, 3.0
      %v1907 = vadd.f32 %v1891, 3.0
      %v1908 = vadd.f32 %v1892, 3.0
      %v1909 = vmax.f32 %v1893, 0.0
      %v1910 = vmax.f32 %v1894, 0.0
      %v1911 = vmax.f32 %v1895, 0.0
      %v1912 = vmax.f32 %v1896, 0.0
      %v1913 = vmax.f32 %v1897, 0.0
      %v1914 = vmax.f32 %v1898, 0.0
      %v1915 = vmax.f32 %v1899, 0.0
      %v1916 = vmax.f32 %v1900, 0.0
      %v1917 = vmax.f32 %v1901, 0.0
      %v1918 = vmax.f32 %v1902, 0.0
      %v1919 = vmax.f32 %v1903, 0.0
      %v1920 = vmax.f32 %v1904, 0.0
      %v1921 = vmax.f32 %v1905, 0.0
      %v1922 = vmax.f32 %v1906, 0.0
      %v1923 = vmax.f32 %v1907, 0.0
      %v1924 = vmax.f32 %v1908, 0.0
      %v1925 = vmin.f32 %v1909, 6.0
      %v1926 = vmin.f32 %v1910, 6.0
      %v1927 = vmin.f32 %v1911, 6.0
      %v1928 = vmin.f32 %v1912, 6.0
      %v1929 = vmin.f32 %v1913, 6.0
      %v1930 = vmin.f32 %v1914, 6.0
      %v1931 = vmin.f32 %v1915, 6.0
      %v1932 = vmin.f32 %v1916, 6.0
      %v1933 = vmin.f32 %v1917, 6.0
      %v1934 = vmin.f32 %v1918, 6.0
      %v1935 = vmin.f32 %v1919, 6.0
      %v1936 = vmin.f32 %v1920, 6.0
      %v1937 = vmin.f32 %v1921, 6.0
      %v1938 = vmin.f32 %v1922, 6.0
      %v1939 = vmin.f32 %v1923, 6.0
      %v1940 = vmin.f32 %v1924, 6.0
      %v1941 = vmul.f32 %v1877, %v1925
      %v1942 = vmul.f32 %v1878, %v1926
      %v1943 = vmul.f32 %v1879, %v1927
      %v1944 = vmul.f32 %v1880, %v1928
      %v1945 = vmul.f32 %v1881, %v1929
      %v1946 = vmul.f32 %v1882, %v1930
      %v1947 = vmul.f32 %v1883, %v1931
      %v1948 = vmul.f32 %v1884, %v1932
      %v1949 = vmul.f32 %v1885, %v1933
      %v1950 = vmul.f32 %v1886, %v1934
      %v1951 = vmul.f32 %v1887, %v1935
      %v1952 = vmul.f32 %v1888, %v1936
      %v1953 = vmul.f32 %v1889, %v1937
      %v1954 = vmul.f32 %v1890, %v1938
      %v1955 = vmul.f32 %v1891, %v1939
      %v1956 = vmul.f32 %v1892, %v1940
      %v1957 = vmul.f32 %v1941, 0.16666667
      %v1958 = vmul.f32 %v1942, 0.16666667
      %v1959 = vmul.f32 %v1943, 0.16666667
      %v1960 = vmul.f32 %v1944, 0.16666667
      %v1961 = vmul.f32 %v1945, 0.16666667
      %v1962 = vmul.f32 %v1946, 0.16666667
      %v1963 = vmul.f32 %v1947, 0.16666667
      %v1964 = vmul.f32 %v1948, 0.16666667
      %v1965 = vmul.f32 %v1949, 0.16666667
      %v1966 = vmul.f32 %v1950, 0.16666667
      %v1967 = vmul.f32 %v1951, 0.16666667
      %v1968 = vmul.f32 %v1952, 0.16666667
      %v1969 = vmul.f32 %v1953, 0.16666667
      %v1970 = vmul.f32 %v1954, 0.16666667
      %v1971 = vmul.f32 %v1955, 0.16666667
      %v1972 = vmul.f32 %v1956, 0.16666667
      %v1973 = vpack.c.bf16 %v1958, %v1957
      %v1974 = vpack.c.bf16 %v1960, %v1959
      %v1975 = vpack.c.bf16 %v1962, %v1961
      %v1976 = vpack.c.bf16 %v1964, %v1963
      %v1977 = vpack.c.bf16 %v1966, %v1965
      %v1978 = vpack.c.bf16 %v1968, %v1967
      %v1979 = vpack.c.bf16 %v1970, %v1969
      %v1980 = vpack.c.bf16 %v1972, %v1971
      %v1981 = vld [vmem:[%s7] sm:$0xf]
      %v1982 = vld [vmem:[%s8] sm:$0x1]
      %v1984 = vlaneseq
      %v1985 = vshrl.u32 %v1984, 7
      %v1986 = vsub.s32 0, %v1985
      %v1987 = vrot.slane %v1982, %v1986
      %v1990 = vsel %vm754, %v1973, 0
      %v1993 = vsel %vm754, %v1974, 0
      %v1996 = vsel %vm754, %v1975, 0
      %v1999 = vsel %vm754, %v1976, 0
      %v2002 = vsel %vm754, %v1977, 0
      %v2005 = vsel %vm754, %v1978, 0
      %v2008 = vsel %vm754, %v1979, 0
      %v2011 = vsel %vm754, %v1980, 0
      %vm2013 = vcmask 1043456
      %v2015 = vsel %vm2013, %v1981, 0
      %2017 = vmatprep.subr.bf16.mxu0 0
      %2018 = vmatpush1.bf16.msra.mxu0 %v2015
      %2019 = vmatprep.subr.bf16.mxu0 0
      %2020 = vmatpush1.bf16.msra.mxu0 0
      %2021 = vmatprep.subr.bf16.mxu0 0
      %2022 = vmatpush1.bf16.msra.mxu0 0
      %2023 = vmatprep.subr.bf16.mxu0 0
      %2024 = vmatpush1.bf16.msra.mxu0 0
      %2025 = vmatprep.subr.bf16.mxu0 0
      %2026 = vmatpush1.bf16.msra.mxu0 0
      %2027 = vmatprep.subr.bf16.mxu0 0
      %2028 = vmatpush1.bf16.msra.mxu0 0
      %2029 = vmatprep.subr.bf16.mxu0 0
      %2030 = vmatpush1.bf16.msra.mxu0 0
      %2031 = vmatprep.subr.bf16.mxu0 0
      %2032 = vmatpush1.bf16.msra.mxu0 0
      %2033 = vmatprep.subr.bf16.mxu0 0
      %2034 = vmatpush1.bf16.msra.mxu0 0
      %2035 = vmatprep.subr.bf16.mxu0 0
      %2036 = vmatpush1.bf16.msra.mxu0 0
      %2037 = vmatprep.subr.bf16.mxu0 0
      %2038 = vmatpush1.bf16.msra.mxu0 0
      %2039 = vmatprep.subr.bf16.mxu0 0
      %2040 = vmatpush1.bf16.msra.mxu0 0
      %2041 = vmatprep.subr.bf16.mxu0 0
      %2042 = vmatpush1.bf16.msra.mxu0 0
      %2043 = vmatprep.subr.bf16.mxu0 0
      %2044 = vmatpush1.bf16.msra.mxu0 0
      %2045 = vmatprep.subr.bf16.mxu0 0
      %2046 = vmatpush1.bf16.msra.mxu0 0
      %2047 = vmatprep.subr.bf16.mxu0 0
      %2048 = vmatpush1.bf16.msra.mxu0 0
      %2049 = vmatprep.mubr.bf16.mxu0 0
      %2050 = vmatmul.mubr.bf16.gmra.mrb[0].mxu0 %v1990
      %v2051 = vpop.f32.mrb[0].mxu0
      %v2052 = vadd.f32 %v1987, %v2051
      %v2053 = vpop.f32.mrb[0].mxu0
      %v2054 = vpop.f32.mrb[0].mxu0
      %v2055 = vadd.f32 %v1987, %v2054
      %v2056 = vpop.f32.mrb[0].mxu0
      %2057 = vmatprep.mubr.bf16.mxu0 0
      %2058 = vmatmul.mubr.bf16.gmra.mrb[0].mxu0 %v1993
      %v2059 = vpop.f32.mrb[0].mxu0
      %v2060 = vadd.f32 %v1987, %v2059
      %v2061 = vpop.f32.mrb[0].mxu0
      %v2062 = vpop.f32.mrb[0].mxu0
      %v2063 = vadd.f32 %v1987, %v2062
      %v2064 = vpop.f32.mrb[0].mxu0
      %2065 = vmatprep.mubr.bf16.mxu0 0
      %2066 = vmatmul.mubr.bf16.gmra.mrb[0].mxu0 %v1996
      %v2067 = vpop.f32.mrb[0].mxu0
      %v2068 = vadd.f32 %v1987, %v2067
      %v2069 = vpop.f32.mrb[0].mxu0
      %v2070 = vpop.f32.mrb[0].mxu0
      %v2071 = vadd.f32 %v1987, %v2070
      %v2072 = vpop.f32.mrb[0].mxu0
      %2073 = vmatprep.mubr.bf16.mxu0 0
      %2074 = vmatmul.mubr.bf16.gmra.mrb[0].mxu0 %v1999
      %v2075 = vpop.f32.mrb[0].mxu0
      %v2076 = vadd.f32 %v1987, %v2075
      %v2077 = vpop.f32.mrb[0].mxu0
      %v2078 = vpop.f32.mrb[0].mxu0
      %v2079 = vadd.f32 %v1987, %v2078
      %v2080 = vpop.f32.mrb[0].mxu0
      %2081 = vmatprep.mubr.bf16.mxu0 0
      %2082 = vmatmul.mubr.bf16.gmra.mrb[0].mxu0 %v2002
      %v2083 = vpop.f32.mrb[0].mxu0
      %v2084 = vadd.f32 %v1987, %v2083
      %v2085 = vpop.f32.mrb[0].mxu0
      %v2086 = vpop.f32.mrb[0].mxu0
      %v2087 = vadd.f32 %v1987, %v2086
      %v2088 = vpop.f32.mrb[0].mxu0
      %2089 = vmatprep.mubr.bf16.mxu0 0
      %2090 = vmatmul.mubr.bf16.gmra.mrb[0].mxu0 %v2005
      %v2091 = vpop.f32.mrb[0].mxu0
      %v2092 = vadd.f32 %v1987, %v2091
      %v2093 = vpop.f32.mrb[0].mxu0
      %v2094 = vpop.f32.mrb[0].mxu0
      %v2095 = vadd.f32 %v1987, %v2094
      %v2096 = vpop.f32.mrb[0].mxu0
      %2097 = vmatprep.mubr.bf16.mxu0 0
      %2098 = vmatmul.mubr.bf16.gmra.mrb[0].mxu0 %v2008
      %v2099 = vpop.f32.mrb[0].mxu0
      %v2100 = vadd.f32 %v1987, %v2099
      %v2101 = vpop.f32.mrb[0].mxu0
      %v2102 = vpop.f32.mrb[0].mxu0
      %v2103 = vadd.f32 %v1987, %v2102
      %v2104 = vpop.f32.mrb[0].mxu0
      %2105 = vmatprep.mubr.bf16.mxu0 0
      %2106 = vmatmul.mubr.bf16.gmra.mrb[0].mxu0 %v2011
      %v2107 = vpop.f32.mrb[0].mxu0
      %v2108 = vadd.f32 %v1987, %v2107
      %v2109 = vpop.f32.mrb[0].mxu0
      %v2110 = vpop.f32.mrb[0].mxu0
      %v2111 = vadd.f32 %v1987, %v2110
      %v2112 = vpop.f32.mrb[0].mxu0
      %2113 = vdwg.mxu0
      %vm2114 = vcmask 130048
      %2115 = vst.msk [vmem:[%s496] sm:$0xff] %vm2114, %v2052
      %2116 = vst.msk [vmem:[%s496 + $0x8] sm:$0xff] %vm2114, %v2055
      %2117 = vst.msk [vmem:[%s496 + $0x10] sm:$0xff] %vm2114, %v2060
      %2118 = vst.msk [vmem:[%s496 + $0x18] sm:$0xff] %vm2114, %v2063
      %2119 = vst.msk [vmem:[%s496 + $0x20] sm:$0xff] %vm2114, %v2068
      %2120 = vst.msk [vmem:[%s496 + $0x28] sm:$0xff] %vm2114, %v2071
      %2121 = vst.msk [vmem:[%s496 + $0x30] sm:$0xff] %vm2114, %v2076
      %2122 = vst.msk [vmem:[%s496 + $0x38] sm:$0xff] %vm2114, %v2079
      %2123 = vst.msk [vmem:[%s496 + $0x40] sm:$0xff] %vm2114, %v2084
      %2124 = vst.msk [vmem:[%s496 + $0x48] sm:$0xff] %vm2114, %v2087
      %2125 = vst.msk [vmem:[%s496 + $0x50] sm:$0xff] %vm2114, %v2092
      %2126 = vst.msk [vmem:[%s496 + $0x58] sm:$0xff] %vm2114, %v2095
      %2127 = vst.msk [vmem:[%s496 + $0x60] sm:$0xff] %vm2114, %v2100
      %2128 = vst.msk [vmem:[%s496 + $0x68] sm:$0xff] %vm2114, %v2103
      %2129 = vst.msk [vmem:[%s496 + $0x70] sm:$0xff] %vm2114, %v2108
      %2130 = vst.msk [vmem:[%s496 + $0x78] sm:$0xff] %vm2114, %v2111
      %s2131 = smul.u32 8, %s25
      %p2132 = scmp.lt.s32.totalorder %s24, 1
      %s2133 = scalar_select %p2132, %s24, 1
      %p2134 = scmp.lt.s32.totalorder %s2131, 15
      %s2135 = scalar_select %p2134, %s2131, 15
      %s2136 = smul.addr %s2135, 2
      %s2137 = smul.addr %s2133, 32
      %s2138 = sadd.s32 %s2136, %s2137
      %s2139 = smul.addr %s2138, 8
      %s2140 = scalar_lea.vmem %s9, %s2139
      // Predicated region
      $region57: #{_lambda_.1} parent=55 // pred_check
        %p2141 = pneg %p270
      $region58: #{_lambda_.1} parent=55 // pred_check_branch
        %2143 = sbr.rel (%p2141) target = $region60
      $region59: #{_lambda_.1} parent=55 // pred_region
        %s2144 = smul.u32 8, %s25
      $region60: #{_lambda_.1} parent=55 // pred_fallthru
        _
    $region56: #{_lambda_.1} parent=5 // pred_fallthru
      _
    %p2145 = scmp.le.s32.totalorder 2, %s15
    // Predicated region
    $region61: #{_lambda_.1} parent=5 // pred_check
      %p2146 = pneg %p2145
    $region62: #{_lambda_.1} parent=5 // pred_check_branch
      %2148 = sbr.rel (%p2146) target = $region64
    $region63: #{_lambda_.1} parent=5 // pred_region
      %s2149 = ssub.s32 %s15, 2
      // Predicated region
      $region65: #{_lambda_.1} parent=63 // pred_check
        %p2150 = pneg %p276
      $region66: #{_lambda_.1} parent=63 // pred_check_branch
        %2152 = sbr.rel (%p2150) target = $region68
      $region67: #{_lambda_.1} parent=63 // pred_region
        %s2153 = smul.u32 8, %s27
        %p2154 = scmp.lt.s32.totalorder %s26, 1
        %s2155 = scalar_select %p2154, %s26, 1
        %p2156 = scmp.lt.s32.totalorder %s2153, 15
        %s2157 = scalar_select %p2156, %s2153, 15
        %s2158 = smul.addr %s2157, 2
        %s2159 = smul.addr %s2155, 32
        %s2160 = sadd.s32 %s2158, %s2159
        %s2161 = smul.addr %s2160, 8
        %s2162 = scalar_lea.vmem %s9, %s2161
      $region68: #{_lambda_.1} parent=63 // pred_fallthru
        _
    $region64: #{_lambda_.1} parent=5 // pred_fallthru
      _
  $region6: #{_lambda_.1} parent=0 // loop_footer
    %s19 = sadd.s32 1, %s15
  $region7: #{_lambda_.1} parent=0 // loop_footer_branch
    %14 = sbr.rel target = $region3
  $region8: #{_lambda_.1} parent=0 // loop_exit
    _

</llo_original>
